<compile_context>
chip_gen: v7x
topology: tpu7x:2x2x1
jax: 0.10.0
libtpu: 0.0.40
codegen_flags: <defaults>
</compile_context>

<pallas_src>
import jax
import jax.numpy as jnp
from jax.experimental import pallas as pl
from jax.experimental.pallas import tpu as pltpu


def _leaky_relu(x, negative_slope=0.2):
    return jnp.where(x > 0, x, negative_slope * x)


def _round_up(x, m):
    return ((x + m - 1) // m) * m


def discriminator_kernel(x_ref, w1_ref, b1_ref, w2_ref, b2_ref, w3_ref, b3_ref,
                         o_ref):
    # x arrives unpadded f32 (TB, 784); cast to bf16 on the VPU just before
    # the MXU matmul (no wrapper-side pad/cast pass over HBM).
    x = x_ref[...].astype(jnp.bfloat16)

    # Layer 1: (TB, 784) bf16 @ (784, 512) bf16 -> f32 accumulate on the MXU.
    h1 = jnp.dot(x, w1_ref[...], preferred_element_type=jnp.float32)
    h1 = _leaky_relu(h1 + b1_ref[...])                       # (TB, 512) f32

    # Layer 2: (TB, 512) bf16 @ (512, 256) bf16 -> f32.
    h2 = jnp.dot(h1.astype(jnp.bfloat16), w2_ref[...],
                 preferred_element_type=jnp.float32)
    h2 = _leaky_relu(h2 + b2_ref[...])                       # (TB, 256) f32

    # Layer 3 (out_features == 1): VPU multiply + lane (XLU) reduction instead
    # of an N=1 MXU matmul (which would waste 255/256 result lanes).
    h3 = jnp.sum(h2 * w3_ref[...], axis=-1)                  # (TB,) f32
    logits = h3[None, :] + b3_ref[...]                       # (1, TB) f32

    # Lane-dense store: last dim == TB (16 for tiny batches, else k*128).
    o_ref[...] = jax.nn.sigmoid(logits).astype(o_ref.dtype)


def _choose_batch_tile(B, block_b):
    """Pick the batch tile.

    Small B: a single tight tile rounded to the bf16 sublane multiple (16).
    Large B: a multiple of 128 (lane-dense output slabs), capped so the grid
    has >= 2 steps, letting the 'parallel' axis shard across v7x's 2 TCs.
    """
    if B <= 128:
        tb = _round_up(B, 16)
        return tb, tb
    tb = min(block_b, _round_up(B, 128))
    tb = _round_up(tb, 128)
    b_pad = _round_up(B, tb)
    if b_pad // tb < 2:
        tb = max(128, _round_up(pl.cdiv(b_pad, 2), 128))
        b_pad = _round_up(B, tb)
    return tb, b_pad


def discriminator_forward(img, params, *, block_b=512):
    """img: (B, C, H, W) float32. Returns validity (B, 1) float32."""
    w1, b1, w2, b2, w3, b3 = params          # f32, weights stored as (in, out)
    B = img.shape[0]
    D, H1 = w1.shape
    H2 = w2.shape[1]

    x = img.reshape(B, -1)                   # == PyTorch img.view(B, -1), f32
    assert x.shape[1] == D

    tb, b_pad = _choose_batch_tile(B, block_b)
    if b_pad != B:
        # Batch-only zero pad (no feature padding, no dtype conversion);
        # skipped entirely when B is already tile-aligned.  Padded rows only
        # produce garbage in their own output rows, which are sliced off.
        x = jnp.pad(x, ((0, b_pad - B), (0, 0)))

    # Resident weights: cast once to bf16 (tiny, one-off).
    w1_b = w1.astype(jnp.bfloat16)
    w2_b = w2.astype(jnp.bfloat16)
    b1_r = b1.reshape(1, H1).astype(jnp.float32)
    b2_r = b2.reshape(1, H2).astype(jnp.float32)
    w3_row = w3.reshape(1, H2).astype(jnp.float32)   # (1, 256) row for the VPU
    b3_s = b3.reshape(1, 1).astype(jnp.float32)

    grid = (b_pad // tb,)
    out = pl.pallas_call(
        discriminator_kernel,
        out_shape=jax.ShapeDtypeStruct((1, b_pad), jnp.float32),
        grid=grid,
        in_specs=[
            pl.BlockSpec((tb, D), lambda i: (i, 0)),     # x tile (pipelined)
            pl.BlockSpec((D, H1), lambda i: (0, 0)),     # w1 (VMEM resident)
            pl.BlockSpec((1, H1), lambda i: (0, 0)),     # b1 (resident)
            pl.BlockSpec((H1, H2), lambda i: (0, 0)),    # w2 (resident)
            pl.BlockSpec((1, H2), lambda i: (0, 0)),     # b2 (resident)
            pl.BlockSpec((1, H2), lambda i: (0, 0)),     # w3 row (resident)
            pl.BlockSpec((1, 1), lambda i: (0, 0)),      # b3 (resident)
        ],
        out_specs=pl.BlockSpec((1, tb), lambda i: (0, i)),  # lane-dense output
        compiler_params=pltpu.CompilerParams(
            dimension_semantics=("parallel",),
            vmem_limit_bytes=32 * 1024 * 1024),
    )(x, w1_b, b1_r, w2_b, b2_r, w3_row, b3_s)

    # Back to PyTorch layout (B, 1).
    return out[0, :B].reshape(B, 1)


def init_params(img_dim=28 * 28 * 1, key=jax.random.PRNGKey(0)):
    """Deterministic init mimicking PyTorch nn.Linear default
    (U[-1/sqrt(in), 1/sqrt(in)]). Weights stored as (in_features, out_features)."""
    dims = [(img_dim, 512), (512, 256), (256, 1)]
    params = []
    for (fan_in, fan_out) in dims:
        key, kw, kb = jax.random.split(key, 3)
        bound = 1.0 / (fan_in ** 0.5)
        w = jax.random.uniform(kw, (fan_in, fan_out), jnp.float32, -bound, bound)
        b = jax.random.uniform(kb, (1, fan_out), jnp.float32, -bound, bound)
        params += [w, b]
    return tuple(params)


def _reference_forward_f32(img, params):
    """Plain-JAX f32 reference (matches the PyTorch module exactly)."""
    w1, b1, w2, b2, w3, b3 = params
    x = img.reshape(img.shape[0], -1)
    h = _leaky_relu(x @ w1 + b1)
    h = _leaky_relu(h @ w2 + b2)
    return jax.nn.sigmoid(h @ w3 + b3)


def _reference_forward_bf16(img, params):
    """Plain-JAX reference emulating the kernel's mixed precision
    (bf16 matmul inputs, f32 accumulation / epilogue)."""
    w1, b1, w2, b2, w3, b3 = params
    x = img.reshape(img.shape[0], -1)
    h = jnp.dot(x.astype(jnp.bfloat16), w1.astype(jnp.bfloat16),
                preferred_element_type=jnp.float32) + b1
    h = _leaky_relu(h)
    h = jnp.dot(h.astype(jnp.bfloat16), w2.astype(jnp.bfloat16),
                preferred_element_type=jnp.float32) + b2
    h = _leaky_relu(h)
    return jax.nn.sigmoid(h @ w3 + b3)


if __name__ == "__main__":
    key = jax.random.PRNGKey(0)
    k_img, k_par, k_img2 = jax.random.split(key, 3)

    B, C, H, W = 2, 1, 28, 28            # PyTorch defaults: img_size=28, channels=1
    img = jax.random.normal(k_img, (B, C, H, W), dtype=jnp.float32)
    params = init_params(img_dim=C * H * W, key=k_par)

    # Small-batch path: tb = 16, grid = (1,).
    out = discriminator_forward(img, params)
    out = jax.block_until_ready(out)
    assert out.shape == (B, 1)

    ref_bf16 = _reference_forward_bf16(img, params)
    ref_f32 = _reference_forward_f32(img, params)
    assert jnp.allclose(out, ref_bf16, atol=5e-3, rtol=5e-3), (out, ref_bf16)
    assert jnp.allclose(out, ref_f32, atol=3e-2, rtol=3e-2), (out, ref_f32)

    # Multi-step path: B > tile -> grid=(3,), exercises the i>0 index_map
    # paths, batch padding, and the megacore-splittable 'parallel' axis.
    B2 = 300
    img2 = jax.random.normal(k_img2, (B2, C, H, W), dtype=jnp.float32)
    out2 = jax.block_until_ready(
        discriminator_forward(img2, params, block_b=128))
    assert out2.shape == (B2, 1)
    ref2 = _reference_forward_bf16(img2, params)
    assert jnp.allclose(out2, ref2, atol=5e-3, rtol=5e-3)

    print("KERNEL_OK")
</pallas_src>

<mosaic_0001>
module attributes {stable_mosaic.version = 11 : i64} {
  func.func @discriminator_kernel(%arg0: i32, %arg1: memref<16x784xf32, #tpu.memory_space<vmem>>, %arg2: memref<784x512xbf16, #tpu.memory_space<vmem>>, %arg3: memref<1x512xf32, #tpu.memory_space<vmem>>, %arg4: memref<512x256xbf16, #tpu.memory_space<vmem>>, %arg5: memref<1x256xf32, #tpu.memory_space<vmem>>, %arg6: memref<1x256xf32, #tpu.memory_space<vmem>>, %arg7: memref<1x1xf32, #tpu.memory_space<vmem>>, %arg8: memref<1x16xf32, #tpu.memory_space<vmem>>) attributes {dimension_semantics = [#tpu.dimension_semantics<parallel>], iteration_bounds = array<i64: 1>, scalar_prefetch = 0 : i64, scratch_operands = 0 : i64, tpu.core_type = #tpu.core_type<tc>, window_params = [{transform_indices = @transform_0, window_bounds = array<i64: 16, 784>}, {pipeline_mode = #tpu.pipeline_mode<synchronous>, transform_indices = @transform_1, window_bounds = array<i64: 784, 512>}, {pipeline_mode = #tpu.pipeline_mode<synchronous>, transform_indices = @transform_2, window_bounds = array<i64: 1, 512>}, {pipeline_mode = #tpu.pipeline_mode<synchronous>, transform_indices = @transform_3, window_bounds = array<i64: 512, 256>}, {pipeline_mode = #tpu.pipeline_mode<synchronous>, transform_indices = @transform_4, window_bounds = array<i64: 1, 256>}, {pipeline_mode = #tpu.pipeline_mode<synchronous>, transform_indices = @transform_5, window_bounds = array<i64: 1, 256>}, {pipeline_mode = #tpu.pipeline_mode<synchronous>, transform_indices = @transform_6, window_bounds = array<i64: 1, 1>}, {transform_indices = @transform_7, window_bounds = array<i64: 1, 16>}]} {
    %c0 = arith.constant 0 : index
    %c0_0 = arith.constant 0 : index
    %0 = vector.load %arg1[%c0, %c0_0] : memref<16x784xf32, #tpu.memory_space<vmem>>, vector<16x784xf32>
    %1 = arith.truncf %0 : vector<16x784xf32> to vector<16x784xbf16>
    %c0_1 = arith.constant 0 : index
    %c0_2 = arith.constant 0 : index
    %2 = vector.load %arg2[%c0_1, %c0_2] : memref<784x512xbf16, #tpu.memory_space<vmem>>, vector<784x512xbf16>
    %cst = arith.constant dense<0.000000e+00> : vector<16x512xf32>
    %3 = tpu.matmul %1, %2, %cst {dimension_numbers = #tpu.dot_dimension_numbers<[1], [0], [0], [1], [0, 0, 1, 1], [], []>} : vector<16x784xbf16>, vector<784x512xbf16>, vector<16x512xf32> -> vector<16x512xf32>
    %c0_3 = arith.constant 0 : index
    %c0_4 = arith.constant 0 : index
    %4 = vector.load %arg3[%c0_3, %c0_4] : memref<1x512xf32, #tpu.memory_space<vmem>>, vector<1x512xf32>
    %5 = vector.broadcast %4 : vector<1x512xf32> to vector<16x512xf32>
    %6 = arith.addf %3, %5 : vector<16x512xf32>
    %cst_5 = arith.constant 0.000000e+00 : f32
    %7 = vector.broadcast %cst_5 : f32 to vector<16x512xf32>
    %8 = arith.cmpf ogt, %6, %7 : vector<16x512xf32>
    %cst_6 = arith.constant 2.000000e-01 : f32
    %9 = vector.broadcast %cst_6 : f32 to vector<16x512xf32>
    %10 = arith.mulf %9, %6 : vector<16x512xf32>
    %11 = arith.select %8, %6, %10 : vector<16x512xi1>, vector<16x512xf32>
    %12 = arith.truncf %11 : vector<16x512xf32> to vector<16x512xbf16>
    %c0_7 = arith.constant 0 : index
    %c0_8 = arith.constant 0 : index
    %13 = vector.load %arg4[%c0_7, %c0_8] : memref<512x256xbf16, #tpu.memory_space<vmem>>, vector<512x256xbf16>
    %cst_9 = arith.constant dense<0.000000e+00> : vector<16x256xf32>
    %14 = tpu.matmul %12, %13, %cst_9 {dimension_numbers = #tpu.dot_dimension_numbers<[1], [0], [0], [1], [0, 0, 1, 1], [], []>} : vector<16x512xbf16>, vector<512x256xbf16>, vector<16x256xf32> -> vector<16x256xf32>
    %c0_10 = arith.constant 0 : index
    %c0_11 = arith.constant 0 : index
    %15 = vector.load %arg5[%c0_10, %c0_11] : memref<1x256xf32, #tpu.memory_space<vmem>>, vector<1x256xf32>
    %16 = vector.broadcast %15 : vector<1x256xf32> to vector<16x256xf32>
    %17 = arith.addf %14, %16 : vector<16x256xf32>
    %cst_12 = arith.constant 0.000000e+00 : f32
    %18 = vector.broadcast %cst_12 : f32 to vector<16x256xf32>
    %19 = arith.cmpf ogt, %17, %18 : vector<16x256xf32>
    %cst_13 = arith.constant 2.000000e-01 : f32
    %20 = vector.broadcast %cst_13 : f32 to vector<16x256xf32>
    %21 = arith.mulf %20, %17 : vector<16x256xf32>
    %22 = arith.select %19, %17, %21 : vector<16x256xi1>, vector<16x256xf32>
    %c0_14 = arith.constant 0 : index
    %c0_15 = arith.constant 0 : index
    %23 = vector.load %arg6[%c0_14, %c0_15] : memref<1x256xf32, #tpu.memory_space<vmem>>, vector<1x256xf32>
    %24 = vector.broadcast %23 : vector<1x256xf32> to vector<16x256xf32>
    %25 = arith.mulf %22, %24 : vector<16x256xf32>
    %cst_16 = arith.constant dense<0.000000e+00> : vector<16xf32>
    %26 = vector.multi_reduction <add>, %25, %cst_16 [1] : vector<16x256xf32> to vector<16xf32>
    %27 = vector.shape_cast %26 : vector<16xf32> to vector<1x16xf32>
    %c0_17 = arith.constant 0 : index
    %c0_18 = arith.constant 0 : index
    %28 = vector.load %arg7[%c0_17, %c0_18] : memref<1x1xf32, #tpu.memory_space<vmem>>, vector<1x1xf32>
    %29 = vector.broadcast %28 : vector<1x1xf32> to vector<1x16xf32>
    %30 = arith.addf %27, %29 : vector<1x16xf32>
    %31 = arith.negf %30 : vector<1x16xf32>
    %32 = math.exp %31 : vector<1x16xf32>
    %cst_19 = arith.constant 1.000000e+00 : f32
    %33 = vector.broadcast %cst_19 : f32 to vector<1x16xf32>
    %34 = arith.addf %33, %32 : vector<1x16xf32>
    %35 = arith.divf %33, %34 : vector<1x16xf32>
    %c0_20 = arith.constant 0 : index
    %c0_21 = arith.constant 0 : index
    %36 = vector.load %arg8[%c0_20, %c0_21] : memref<1x16xf32, #tpu.memory_space<vmem>>, vector<1x16xf32>
    tpu.vector_store %arg8[%c0_20, %c0_21], %35 {strides = array<i32>} : memref<1x16xf32, #tpu.memory_space<vmem>>, vector<1x16xf32>,
    return
  }
  func.func @transform_0(%arg0: i32) -> (i32, i32) {
    %c0_i32 = arith.constant 0 : i32
    %c0_i32_0 = arith.constant 0 : i32
    return %arg0, %c0_i32 : i32, i32
  }
  func.func @transform_1(%arg0: i32) -> (i32, i32) {
    %c0_i32 = arith.constant 0 : i32
    %c0_i32_0 = arith.constant 0 : i32
    %c0_i32_1 = arith.constant 0 : i32
    return %c0_i32, %c0_i32_0 : i32, i32
  }
  func.func @transform_2(%arg0: i32) -> (i32, i32) {
    %c0_i32 = arith.constant 0 : i32
    %c0_i32_0 = arith.constant 0 : i32
    %c0_i32_1 = arith.constant 0 : i32
    return %c0_i32, %c0_i32_0 : i32, i32
  }
  func.func @transform_3(%arg0: i32) -> (i32, i32) {
    %c0_i32 = arith.constant 0 : i32
    %c0_i32_0 = arith.constant 0 : i32
    %c0_i32_1 = arith.constant 0 : i32
    return %c0_i32, %c0_i32_0 : i32, i32
  }
  func.func @transform_4(%arg0: i32) -> (i32, i32) {
    %c0_i32 = arith.constant 0 : i32
    %c0_i32_0 = arith.constant 0 : i32
    %c0_i32_1 = arith.constant 0 : i32
    return %c0_i32, %c0_i32_0 : i32, i32
  }
  func.func @transform_5(%arg0: i32) -> (i32, i32) {
    %c0_i32 = arith.constant 0 : i32
    %c0_i32_0 = arith.constant 0 : i32
    %c0_i32_1 = arith.constant 0 : i32
    return %c0_i32, %c0_i32_0 : i32, i32
  }
  func.func @transform_6(%arg0: i32) -> (i32, i32) {
    %c0_i32 = arith.constant 0 : i32
    %c0_i32_0 = arith.constant 0 : i32
    %c0_i32_1 = arith.constant 0 : i32
    return %c0_i32, %c0_i32_0 : i32, i32
  }
  func.func @transform_7(%arg0: i32) -> (i32, i32) {
    %c0_i32 = arith.constant 0 : i32
    %c0_i32_0 = arith.constant 0 : i32
    return %c0_i32, %arg0 : i32, i32
  }
}

</mosaic_0001>

<llo_original>
// kernel: tpu_custom_call.1
$region0: #{tpu_custom_call.1}
  #allocation0 [shape = 'u32[]', space=smem, size = 0x4, offset = 0x4, fixed_abs, tag = 'smem constant byte address 0x4 - core index']
  #allocation1 [shape = 'u32[144,128]{1,0:T(1,128)}', space=vmem, size = 0x12000, scoped, tag = 'internal scratch']
  #allocation2 [shape = 'f32[1,1]{1,0:T(1,128)S(1)}', space=vmem, size = 0x200, scoped, tag = 'scoped memory for tpu_custom_call.1']
  %s0 = inlined_call_operand.hbm [shape: f32[16,784], index: 0, kind: input, shape index: {}]
  %s1 = inlined_call_operand.hbm [shape: bf16[784,512], index: 1, kind: input, shape index: {}]
  %s2 = inlined_call_operand.vmem [shape: f32[1,512], index: 2, kind: input, shape index: {}]
  %s3 = inlined_call_operand.hbm [shape: bf16[512,256], index: 3, kind: input, shape index: {}]
  %s4 = inlined_call_operand.vmem [shape: f32[1,256], index: 4, kind: input, shape index: {}]
  %s5 = inlined_call_operand.vmem [shape: f32[1,256], index: 5, kind: input, shape index: {}]
  %s6 = inlined_call_operand.<no memory space> [shape: f32[1,1], index: 6, kind: input, shape index: {}]
  %s7 = inlined_call_operand.hbm [shape: f32[1,16], index: 7, kind: output, shape index: {}]
  %s8 = sld [smem:[#allocation0]]
  $region50: #{tpu_custom_call.1} parent=0
    _
  %s10 = ssub.s32 1, %s8
  %s11 = scalar_select 0, %s10, %s8
  %v12 = vstv %s6
  %13 = vst [vmem:[#allocation2] sm:$0x1] %v12
  $region1: #{tpu_custom_call.1} parent=0
    #allocation3 [shape = 'u8[57344]{0}', space=vmem, size = 0xe000, scoped, tag = 'input window, operand 0, single buffered']
    #allocation4 [shape = 's32[1]{0}', space=sflag, size = 0x4, scoped, tag = 'scoped memory for tpu_custom_call.1']
    #allocation5 [shape = 's32[1]{0}', space=sflag, size = 0x4, scoped, tag = 'scoped memory for tpu_custom_call.1']
    #allocation6 [shape = 'u8[802816]{0}', space=vmem, size = 0xc4000, scoped, tag = 'input window, operand 1, single buffered']
    #allocation7 [shape = 's32[1]{0}', space=sflag, size = 0x4, scoped, tag = 'scoped memory for tpu_custom_call.1']
    #allocation8 [shape = 'u8[262144]{0}', space=vmem, size = 0x40000, scoped, tag = 'input window, operand 3, single buffered']
    #allocation9 [shape = 'u8[512]{0}', space=vmem, size = 0x400, scoped, tag = 'output window, operand 0, single buffered']
    %14 = vsyncpa [#allocation4], 0
    %15 = vsyncpa [#allocation7], 0
    %16 = vsyncpa [#allocation5], 0
    // Predicated region
    $region2: #{tpu_custom_call.1} parent=1 // pred_check
      _
    $region3: #{tpu_custom_call.1} parent=1 // pred_check_branch
      %18 = sbr.rel (0) target = $region5
    $region4: #{tpu_custom_call.1} parent=1 // pred_region
      %s20 = ssub.s32 1792, 1792
      %21 = vsyncadd [#allocation4], %s20
      %s22 = sshll.u32 [#allocation3], 4
      %s23 = int_to_ptr.vmem [resolvable:$true] %s22
      %28 = dma.hbm_to_vmem [thread:$0]  %s0, 1792, %s23, [#allocation4], 896, 896, 56
    $region5: #{tpu_custom_call.1} parent=1 // pred_fallthru
      _
    // Predicated region
    $region6: #{tpu_custom_call.1} parent=1 // pred_check
      _
    $region7: #{tpu_custom_call.1} parent=1 // pred_check_branch
      %30 = sbr.rel (0) target = $region9
    $region8: #{tpu_custom_call.1} parent=1 // pred_region
      %s32 = ssub.s32 25088, 25088
      %33 = vsyncadd [#allocation7], %s32
      %s34 = sshll.u32 [#allocation6], 4
      %s35 = int_to_ptr.vmem [resolvable:$true] %s34
      %40 = dma.hbm_to_vmem [thread:$0]  %s1, 25088, %s35, [#allocation7], 256, 256, 16
    $region9: #{tpu_custom_call.1} parent=1 // pred_fallthru
      _
    // Predicated region
    $region10: #{tpu_custom_call.1} parent=1 // pred_check
      _
    $region11: #{tpu_custom_call.1} parent=1 // pred_check_branch
      %42 = sbr.rel (0) target = $region13
    $region12: #{tpu_custom_call.1} parent=1 // pred_region
      _
    $region13: #{tpu_custom_call.1} parent=1 // pred_fallthru
      _
    // Predicated region
    $region14: #{tpu_custom_call.1} parent=1 // pred_check
      _
    $region15: #{tpu_custom_call.1} parent=1 // pred_check_branch
      %44 = sbr.rel (0) target = $region17
    $region16: #{tpu_custom_call.1} parent=1 // pred_region
      %s46 = ssub.s32 8192, 8192
      %47 = vsyncadd [#allocation7], %s46
      %s48 = sshll.u32 [#allocation8], 4
      %s49 = int_to_ptr.vmem [resolvable:$true] %s48
      %54 = dma.hbm_to_vmem [thread:$0]  %s3, 8192, %s49, [#allocation7], 128, 128, 8
    $region17: #{tpu_custom_call.1} parent=1 // pred_fallthru
      _
    // Predicated region
    $region18: #{tpu_custom_call.1} parent=1 // pred_check
      _
    $region19: #{tpu_custom_call.1} parent=1 // pred_check_branch
      %56 = sbr.rel (0) target = $region21
    $region20: #{tpu_custom_call.1} parent=1 // pred_region
      _
    $region21: #{tpu_custom_call.1} parent=1 // pred_fallthru
      _
    // Predicated region
    $region22: #{tpu_custom_call.1} parent=1 // pred_check
      _
    $region23: #{tpu_custom_call.1} parent=1 // pred_check_branch
      %58 = sbr.rel (0) target = $region25
    $region24: #{tpu_custom_call.1} parent=1 // pred_region
      _
    $region25: #{tpu_custom_call.1} parent=1 // pred_fallthru
      _
    // Predicated region
    $region26: #{tpu_custom_call.1} parent=1 // pred_check
      _
    $region27: #{tpu_custom_call.1} parent=1 // pred_check_branch
      %60 = sbr.rel (0) target = $region29
    $region28: #{tpu_custom_call.1} parent=1 // pred_region
      _
    $region29: #{tpu_custom_call.1} parent=1 // pred_fallthru
      _
    // Predicated region
    $region30: #{tpu_custom_call.1} parent=1 // pred_check
      _
    $region31: #{tpu_custom_call.1} parent=1 // pred_check_branch
      %62 = sbr.rel (0) target = $region33
    $region32: #{tpu_custom_call.1} parent=1 // pred_region
      %63 = dma.done [#allocation4], 1792
    $region33: #{tpu_custom_call.1} parent=1 // pred_fallthru
      _
    // Predicated region
    $region34: #{tpu_custom_call.1} parent=1 // pred_check
      _
    $region35: #{tpu_custom_call.1} parent=1 // pred_check_branch
      %65 = sbr.rel (0) target = $region37
    $region36: #{tpu_custom_call.1} parent=1 // pred_region
      %66 = dma.done [#allocation7], 25088
    $region37: #{tpu_custom_call.1} parent=1 // pred_fallthru
      _
    // Predicated region
    $region38: #{tpu_custom_call.1} parent=1 // pred_check
      _
    $region39: #{tpu_custom_call.1} parent=1 // pred_check_branch
      %68 = sbr.rel (0) target = $region41
    $region40: #{tpu_custom_call.1} parent=1 // pred_region
      %69 = dma.done [#allocation7], 8192
    $region41: #{tpu_custom_call.1} parent=1 // pred_fallthru
      _
    %v71 = vld [vmem:[#allocation3] sm:$0xff]
    %v72 = vld [vmem:[#allocation3 + $0x8] sm:$0xff]
    %v73 = vld [vmem:[#allocation3 + $0x10] sm:$0xff]
    %v74 = vld [vmem:[#allocation3 + $0x18] sm:$0xff]
    %v75 = vld [vmem:[#allocation3 + $0x20] sm:$0xff]
    %v76 = vld [vmem:[#allocation3 + $0x28] sm:$0xff]
    %v77 = vld [vmem:[#allocation3 + $0x30] sm:$0xff]
    %v78 = vld [vmem:[#allocation3 + $0x38] sm:$0xff]
    %v79 = vld [vmem:[#allocation3 + $0x40] sm:$0xff]
    %v80 = vld [vmem:[#allocation3 + $0x48] sm:$0xff]
    %v81 = vld [vmem:[#allocation3 + $0x50] sm:$0xff]
    %v82 = vld [vmem:[#allocation3 + $0x58] sm:$0xff]
    %v83 = vld [vmem:[#allocation3 + $0x60] sm:$0xff]
    %v84 = vld [vmem:[#allocation3 + $0x68] sm:$0xff]
    %v85 = vpack.c.bf16 %v78, %v71
    %v86 = vpack.c.bf16 %v79, %v72
    %v87 = vpack.c.bf16 %v80, %v73
    %v88 = vpack.c.bf16 %v81, %v74
    %v89 = vpack.c.bf16 %v82, %v75
    %v90 = vpack.c.bf16 %v83, %v76
    %v91 = vpack.c.bf16 %v84, %v77
    %v92 = vld [vmem:[#allocation6] sm:$0xff]
    %v93 = vld [vmem:[#allocation6 + $0x8] sm:$0xff]
    %v94 = vld [vmem:[#allocation6 + $0x10] sm:$0xff]
    %v95 = vld [vmem:[#allocation6 + $0x18] sm:$0xff]
    %v96 = vld [vmem:[#allocation6 + $0x20] sm:$0xff]
    %v97 = vld [vmem:[#allocation6 + $0x28] sm:$0xff]
    %v98 = vld [vmem:[#allocation6 + $0x30] sm:$0xff]
    %v99 = vld [vmem:[#allocation6 + $0x38] sm:$0xff]
    %v100 = vld [vmem:[#allocation6 + $0x40] sm:$0xff]
    %v101 = vld [vmem:[#allocation6 + $0x48] sm:$0xff]
    %v102 = vld [vmem:[#allocation6 + $0x50] sm:$0xff]
    %v103 = vld [vmem:[#allocation6 + $0x58] sm:$0xff]
    %v104 = vld [vmem:[#allocation6 + $0x60] sm:$0xff]
    %v105 = vld [vmem:[#allocation6 + $0x68] sm:$0xff]
    %v106 = vld [vmem:[#allocation6 + $0x70] sm:$0xff]
    %v107 = vld [vmem:[#allocation6 + $0x78] sm:$0xff]
    %v108 = vld [vmem:[#allocation6 + $0x80] sm:$0xff]
    %v109 = vld [vmem:[#allocation6 + $0x88] sm:$0xff]
    %v110 = vld [vmem:[#allocation6 + $0x90] sm:$0xff]
    %v111 = vld [vmem:[#allocation6 + $0x98] sm:$0xff]
    %v112 = vld [vmem:[#allocation6 + $0xa0] sm:$0xff]
    %v113 = vld [vmem:[#allocation6 + $0xa8] sm:$0xff]
    %v114 = vld [vmem:[#allocation6 + $0xb0] sm:$0xff]
    %v115 = vld [vmem:[#allocation6 + $0xb8] sm:$0xff]
    %v116 = vld [vmem:[#allocation6 + $0xc0] sm:$0xff]
    %v117 = vld [vmem:[#allocation6 + $0xc8] sm:$0xff]
    %v118 = vld [vmem:[#allocation6 + $0xd0] sm:$0xff]
    %v119 = vld [vmem:[#allocation6 + $0xd8] sm:$0xff]
    %v120 = vld [vmem:[#allocation6 + $0xe0] sm:$0xff]
    %v121 = vld [vmem:[#allocation6 + $0xe8] sm:$0xff]
    %v122 = vld [vmem:[#allocation6 + $0xf0] sm:$0xff]
    %v123 = vld [vmem:[#allocation6 + $0xf8] sm:$0xff]
    %v124 = vld [vmem:[#allocation6 + $0x100] sm:$0xff]
    %v125 = vld [vmem:[#allocation6 + $0x108] sm:$0xff]
    %v126 = vld [vmem:[#allocation6 + $0x110] sm:$0xff]
    %v127 = vld [vmem:[#allocation6 + $0x118] sm:$0xff]
    %v128 = vld [vmem:[#allocation6 + $0x120] sm:$0xff]
    %v129 = vld [vmem:[#allocation6 + $0x128] sm:$0xff]
    %v130 = vld [vmem:[#allocation6 + $0x130] sm:$0xff]
    %v131 = vld [vmem:[#allocation6 + $0x138] sm:$0xff]
    %v132 = vld [vmem:[#allocation6 + $0x140] sm:$0xff]
    %v133 = vld [vmem:[#allocation6 + $0x148] sm:$0xff]
    %v134 = vld [vmem:[#allocation6 + $0x150] sm:$0xff]
    %v135 = vld [vmem:[#allocation6 + $0x158] sm:$0xff]
    %v136 = vld [vmem:[#allocation6 + $0x160] sm:$0xff]
    %v137 = vld [vmem:[#allocation6 + $0x168] sm:$0xff]
    %v138 = vld [vmem:[#allocation6 + $0x170] sm:$0xff]
    %v139 = vld [vmem:[#allocation6 + $0x178] sm:$0xff]
    %v140 = vld [vmem:[#allocation6 + $0x180] sm:$0xff]
    %v141 = vld [vmem:[#allocation6 + $0x188] sm:$0xff]
    %v142 = vld [vmem:[#allocation6 + $0x190] sm:$0xff]
    %v143 = vld [vmem:[#allocation6 + $0x198] sm:$0xff]
    %v144 = vld [vmem:[#allocation6 + $0x1a0] sm:$0xff]
    %v145 = vld [vmem:[#allocation6 + $0x1a8] sm:$0xff]
    %v146 = vld [vmem:[#allocation6 + $0x1b0] sm:$0xff]
    %v147 = vld [vmem:[#allocation6 + $0x1b8] sm:$0xff]
    %v148 = vld [vmem:[#allocation6 + $0x1c0] sm:$0xff]
    %v149 = vld [vmem:[#allocation6 + $0x1c8] sm:$0xff]
    %v150 = vld [vmem:[#allocation6 + $0x1d0] sm:$0xff]
    %v151 = vld [vmem:[#allocation6 + $0x1d8] sm:$0xff]
    %v152 = vld [vmem:[#allocation6 + $0x1e0] sm:$0xff]
    %v153 = vld [vmem:[#allocation6 + $0x1e8] sm:$0xff]
    %v154 = vld [vmem:[#allocation6 + $0x1f0] sm:$0xff]
    %v155 = vld [vmem:[#allocation6 + $0x1f8] sm:$0xff]
    %v156 = vld [vmem:[#allocation6 + $0x200] sm:$0xff]
    %v157 = vld [vmem:[#allocation6 + $0x208] sm:$0xff]
    %v158 = vld [vmem:[#allocation6 + $0x210] sm:$0xff]
    %v159 = vld [vmem:[#allocation6 + $0x218] sm:$0xff]
    %v160 = vld [vmem:[#allocation6 + $0x220] sm:$0xff]
    %v161 = vld [vmem:[#allocation6 + $0x228] sm:$0xff]
    %v162 = vld [vmem:[#allocation6 + $0x230] sm:$0xff]
    %v163 = vld [vmem:[#allocation6 + $0x238] sm:$0xff]
    %v164 = vld [vmem:[#allocation6 + $0x240] sm:$0xff]
    %v165 = vld [vmem:[#allocation6 + $0x248] sm:$0xff]
    %v166 = vld [vmem:[#allocation6 + $0x250] sm:$0xff]
    %v167 = vld [vmem:[#allocation6 + $0x258] sm:$0xff]
    %v168 = vld [vmem:[#allocation6 + $0x260] sm:$0xff]
    %v169 = vld [vmem:[#allocation6 + $0x268] sm:$0xff]
    %v170 = vld [vmem:[#allocation6 + $0x270] sm:$0xff]
    %v171 = vld [vmem:[#allocation6 + $0x278] sm:$0xff]
    %v172 = vld [vmem:[#allocation6 + $0x280] sm:$0xff]
    %v173 = vld [vmem:[#allocation6 + $0x288] sm:$0xff]
    %v174 = vld [vmem:[#allocation6 + $0x290] sm:$0xff]
    %v175 = vld [vmem:[#allocation6 + $0x298] sm:$0xff]
    %v176 = vld [vmem:[#allocation6 + $0x2a0] sm:$0xff]
    %v177 = vld [vmem:[#allocation6 + $0x2a8] sm:$0xff]
    %v178 = vld [vmem:[#allocation6 + $0x2b0] sm:$0xff]
    %v179 = vld [vmem:[#allocation6 + $0x2b8] sm:$0xff]
    %v180 = vld [vmem:[#allocation6 + $0x2c0] sm:$0xff]
    %v181 = vld [vmem:[#allocation6 + $0x2c8] sm:$0xff]
    %v182 = vld [vmem:[#allocation6 + $0x2d0] sm:$0xff]
    %v183 = vld [vmem:[#allocation6 + $0x2d8] sm:$0xff]
    %v184 = vld [vmem:[#allocation6 + $0x2e0] sm:$0xff]
    %v185 = vld [vmem:[#allocation6 + $0x2e8] sm:$0xff]
    %v186 = vld [vmem:[#allocation6 + $0x2f0] sm:$0xff]
    %v187 = vld [vmem:[#allocation6 + $0x2f8] sm:$0xff]
    %v188 = vld [vmem:[#allocation6 + $0x300] sm:$0xff]
    %v189 = vld [vmem:[#allocation6 + $0x308] sm:$0xff]
    %v190 = vld [vmem:[#allocation6 + $0x310] sm:$0xff]
    %v191 = vld [vmem:[#allocation6 + $0x318] sm:$0xff]
    %v192 = vld [vmem:[#allocation6 + $0x320] sm:$0xff]
    %v193 = vld [vmem:[#allocation6 + $0x328] sm:$0xff]
    %v194 = vld [vmem:[#allocation6 + $0x330] sm:$0xff]
    %v195 = vld [vmem:[#allocation6 + $0x338] sm:$0xff]
    %v196 = vld [vmem:[#allocation6 + $0x340] sm:$0xff]
    %v197 = vld [vmem:[#allocation6 + $0x348] sm:$0xff]
    %v198 = vld [vmem:[#allocation6 + $0x350] sm:$0xff]
    %v199 = vld [vmem:[#allocation6 + $0x358] sm:$0xff]
    %v200 = vld [vmem:[#allocation6 + $0x360] sm:$0xff]
    %v201 = vld [vmem:[#allocation6 + $0x368] sm:$0xff]
    %v202 = vld [vmem:[#allocation6 + $0x370] sm:$0xff]
    %v203 = vld [vmem:[#allocation6 + $0x378] sm:$0xff]
    %v204 = vld [vmem:[#allocation6 + $0x380] sm:$0xff]
    %v205 = vld [vmem:[#allocation6 + $0x388] sm:$0xff]
    %v206 = vld [vmem:[#allocation6 + $0x390] sm:$0xff]
    %v207 = vld [vmem:[#allocation6 + $0x398] sm:$0xff]
    %v208 = vld [vmem:[#allocation6 + $0x3a0] sm:$0xff]
    %v209 = vld [vmem:[#allocation6 + $0x3a8] sm:$0xff]
    %v210 = vld [vmem:[#allocation6 + $0x3b0] sm:$0xff]
    %v211 = vld [vmem:[#allocation6 + $0x3b8] sm:$0xff]
    %v212 = vld [vmem:[#allocation6 + $0x3c0] sm:$0xff]
    %v213 = vld [vmem:[#allocation6 + $0x3c8] sm:$0xff]
    %v214 = vld [vmem:[#allocation6 + $0x3d0] sm:$0xff]
    %v215 = vld [vmem:[#allocation6 + $0x3d8] sm:$0xff]
    %v216 = vld [vmem:[#allocation6 + $0x3e0] sm:$0xff]
    %v217 = vld [vmem:[#allocation6 + $0x3e8] sm:$0xff]
    %v218 = vld [vmem:[#allocation6 + $0x3f0] sm:$0xff]
    %v219 = vld [vmem:[#allocation6 + $0x3f8] sm:$0xff]
    %v220 = vld [vmem:[#allocation6 + $0x400] sm:$0xff]
    %v221 = vld [vmem:[#allocation6 + $0x408] sm:$0xff]
    %v222 = vld [vmem:[#allocation6 + $0x410] sm:$0xff]
    %v223 = vld [vmem:[#allocation6 + $0x418] sm:$0xff]
    %v224 = vld [vmem:[#allocation6 + $0x420] sm:$0xff]
    %v225 = vld [vmem:[#allocation6 + $0x428] sm:$0xff]
    %v226 = vld [vmem:[#allocation6 + $0x430] sm:$0xff]
    %v227 = vld [vmem:[#allocation6 + $0x438] sm:$0xff]
    %v228 = vld [vmem:[#allocation6 + $0x440] sm:$0xff]
    %v229 = vld [vmem:[#allocation6 + $0x448] sm:$0xff]
    %v230 = vld [vmem:[#allocation6 + $0x450] sm:$0xff]
    %v231 = vld [vmem:[#allocation6 + $0x458] sm:$0xff]
    %v232 = vld [vmem:[#allocation6 + $0x460] sm:$0xff]
    %v233 = vld [vmem:[#allocation6 + $0x468] sm:$0xff]
    %v234 = vld [vmem:[#allocation6 + $0x470] sm:$0xff]
    %v235 = vld [vmem:[#allocation6 + $0x478] sm:$0xff]
    %v236 = vld [vmem:[#allocation6 + $0x480] sm:$0xff]
    %v237 = vld [vmem:[#allocation6 + $0x488] sm:$0xff]
    %v238 = vld [vmem:[#allocation6 + $0x490] sm:$0xff]
    %v239 = vld [vmem:[#allocation6 + $0x498] sm:$0xff]
    %v240 = vld [vmem:[#allocation6 + $0x4a0] sm:$0xff]
    %v241 = vld [vmem:[#allocation6 + $0x4a8] sm:$0xff]
    %v242 = vld [vmem:[#allocation6 + $0x4b0] sm:$0xff]
    %v243 = vld [vmem:[#allocation6 + $0x4b8] sm:$0xff]
    %v244 = vld [vmem:[#allocation6 + $0x4c0] sm:$0xff]
    %v245 = vld [vmem:[#allocation6 + $0x4c8] sm:$0xff]
    %v246 = vld [vmem:[#allocation6 + $0x4d0] sm:$0xff]
    %v247 = vld [vmem:[#allocation6 + $0x4d8] sm:$0xff]
    %v248 = vld [vmem:[#allocation6 + $0x4e0] sm:$0xff]
    %v249 = vld [vmem:[#allocation6 + $0x4e8] sm:$0xff]
    %v250 = vld [vmem:[#allocation6 + $0x4f0] sm:$0xff]
    %v251 = vld [vmem:[#allocation6 + $0x4f8] sm:$0xff]
    %v252 = vld [vmem:[#allocation6 + $0x500] sm:$0xff]
    %v253 = vld [vmem:[#allocation6 + $0x508] sm:$0xff]
    %v254 = vld [vmem:[#allocation6 + $0x510] sm:$0xff]
    %v255 = vld [vmem:[#allocation6 + $0x518] sm:$0xff]
    %v256 = vld [vmem:[#allocation6 + $0x520] sm:$0xff]
    %v257 = vld [vmem:[#allocation6 + $0x528] sm:$0xff]
    %v258 = vld [vmem:[#allocation6 + $0x530] sm:$0xff]
    %v259 = vld [vmem:[#allocation6 + $0x538] sm:$0xff]
    %v260 = vld [vmem:[#allocation6 + $0x540] sm:$0xff]
    %v261 = vld [vmem:[#allocation6 + $0x548] sm:$0xff]
    %v262 = vld [vmem:[#allocation6 + $0x550] sm:$0xff]
    %v263 = vld [vmem:[#allocation6 + $0x558] sm:$0xff]
    %v264 = vld [vmem:[#allocation6 + $0x560] sm:$0xff]
    %v265 = vld [vmem:[#allocation6 + $0x568] sm:$0xff]
    %v266 = vld [vmem:[#allocation6 + $0x570] sm:$0xff]
    %v267 = vld [vmem:[#allocation6 + $0x578] sm:$0xff]
    %v268 = vld [vmem:[#allocation6 + $0x580] sm:$0xff]
    %v269 = vld [vmem:[#allocation6 + $0x588] sm:$0xff]
    %v270 = vld [vmem:[#allocation6 + $0x590] sm:$0xff]
    %v271 = vld [vmem:[#allocation6 + $0x598] sm:$0xff]
    %v272 = vld [vmem:[#allocation6 + $0x5a0] sm:$0xff]
    %v273 = vld [vmem:[#allocation6 + $0x5a8] sm:$0xff]
    %v274 = vld [vmem:[#allocation6 + $0x5b0] sm:$0xff]
    %v275 = vld [vmem:[#allocation6 + $0x5b8] sm:$0xff]
    %v276 = vld [vmem:[#allocation6 + $0x5c0] sm:$0xff]
    %v277 = vld [vmem:[#allocation6 + $0x5c8] sm:$0xff]
    %v278 = vld [vmem:[#allocation6 + $0x5d0] sm:$0xff]
    %v279 = vld [vmem:[#allocation6 + $0x5d8] sm:$0xff]
    %v280 = vld [vmem:[#allocation6 + $0x5e0] sm:$0xff]
    %v281 = vld [vmem:[#allocation6 + $0x5e8] sm:$0xff]
    %v282 = vld [vmem:[#allocation6 + $0x5f0] sm:$0xff]
    %v283 = vld [vmem:[#allocation6 + $0x5f8] sm:$0xff]
    %v284 = vld [vmem:[#allocation6 + $0x600] sm:$0xff]
    %v285 = vld [vmem:[#allocation6 + $0x608] sm:$0xff]
    %v286 = vld [vmem:[#allocation6 + $0x610] sm:$0xff]
    %v287 = vld [vmem:[#allocation6 + $0x618] sm:$0xff]
    %v288 = vld [vmem:[%s2] sm:$0xf]
    %v290 = vlaneseq
    %v291 = vshrl.u32 %v290, 7
    %v292 = vsub.s32 0, %v291
    %v293 = vrot.slane %v288, %v292
    %v294 = vlaneseq
    %v295 = vshrl.u32 %v294, 7
    %v296 = vsub.s32 1, %v295
    %v297 = vrot.slane %v288, %v296
    %v298 = vlaneseq
    %v299 = vshrl.u32 %v298, 7
    %v300 = vsub.s32 2, %v299
    %v301 = vrot.slane %v288, %v300
    %v302 = vlaneseq
    %v303 = vshrl.u32 %v302, 7
    %v304 = vsub.s32 3, %v303
    %v305 = vrot.slane %v288, %v304
    %v506 = vunpack.c.l.b16 %v92
    %v507 = vunpack.c.h.b16 %v92
    %v508 = vunpack.c.l.b16 %v93
    %v509 = vunpack.c.h.b16 %v93
    %v510 = vunpack.c.l.b16 %v94
    %v511 = vunpack.c.h.b16 %v94
    %v512 = vunpack.c.l.b16 %v95
    %v513 = vunpack.c.h.b16 %v95
    %v514 = vunpack.c.l.b16 %v96
    %v515 = vunpack.c.h.b16 %v96
    %v516 = vunpack.c.l.b16 %v97
    %v517 = vunpack.c.h.b16 %v97
    %v518 = vunpack.c.l.b16 %v98
    %v519 = vunpack.c.h.b16 %v98
    %v520 = vunpack.c.l.b16 %v99
    %v521 = vunpack.c.h.b16 %v99
    %v522 = vunpack.c.l.b16 %v100
    %v523 = vunpack.c.h.b16 %v100
    %v524 = vunpack.c.l.b16 %v101
    %v525 = vunpack.c.h.b16 %v101
    %v526 = vunpack.c.l.b16 %v102
    %v527 = vunpack.c.h.b16 %v102
    %v528 = vunpack.c.l.b16 %v103
    %v529 = vunpack.c.h.b16 %v103
    %v530 = vunpack.c.l.b16 %v104
    %v531 = vunpack.c.h.b16 %v104
    %v532 = vunpack.c.l.b16 %v105
    %v533 = vunpack.c.h.b16 %v105
    %v534 = vunpack.c.l.b16 %v106
    %v535 = vunpack.c.h.b16 %v106
    %v536 = vunpack.c.l.b16 %v107
    %v537 = vunpack.c.h.b16 %v107
    %v538 = vunpack.c.l.b16 %v108
    %v539 = vunpack.c.h.b16 %v108
    %v540 = vunpack.c.l.b16 %v109
    %v541 = vunpack.c.h.b16 %v109
    %v542 = vunpack.c.l.b16 %v110
    %v543 = vunpack.c.h.b16 %v110
    %v544 = vunpack.c.l.b16 %v111
    %v545 = vunpack.c.h.b16 %v111
    %v546 = vunpack.c.l.b16 %v112
    %v547 = vunpack.c.h.b16 %v112
    %v548 = vunpack.c.l.b16 %v113
    %v549 = vunpack.c.h.b16 %v113
    %v550 = vunpack.c.l.b16 %v114
    %v551 = vunpack.c.h.b16 %v114
    %v552 = vunpack.c.l.b16 %v115
    %v553 = vunpack.c.h.b16 %v115
    %v554 = vunpack.c.l.b16 %v116
    %v555 = vunpack.c.h.b16 %v116
    %v556 = vunpack.c.l.b16 %v117
    %v557 = vunpack.c.h.b16 %v117
    %v558 = vunpack.c.l.b16 %v118
    %v559 = vunpack.c.h.b16 %v118
    %v560 = vunpack.c.l.b16 %v119
    %v561 = vunpack.c.h.b16 %v119
    %v562 = vunpack.c.l.b16 %v120
    %v563 = vunpack.c.h.b16 %v120
    %v564 = vunpack.c.l.b16 %v121
    %v565 = vunpack.c.h.b16 %v121
    %v566 = vunpack.c.l.b16 %v122
    %v567 = vunpack.c.h.b16 %v122
    %v568 = vunpack.c.l.b16 %v123
    %v569 = vunpack.c.h.b16 %v123
    %v570 = vunpack.c.l.b16 %v124
    %v571 = vunpack.c.h.b16 %v124
    %v572 = vunpack.c.l.b16 %v125
    %v573 = vunpack.c.h.b16 %v125
    %v574 = vunpack.c.l.b16 %v126
    %v575 = vunpack.c.h.b16 %v126
    %v576 = vunpack.c.l.b16 %v127
    %v577 = vunpack.c.h.b16 %v127
    %v578 = vunpack.c.l.b16 %v128
    %v579 = vunpack.c.h.b16 %v128
    %v580 = vunpack.c.l.b16 %v129
    %v581 = vunpack.c.h.b16 %v129
    %v582 = vunpack.c.l.b16 %v130
    %v583 = vunpack.c.h.b16 %v130
    %v584 = vunpack.c.l.b16 %v131
    %v585 = vunpack.c.h.b16 %v131
    %v586 = vunpack.c.l.b16 %v132
    %v587 = vunpack.c.h.b16 %v132
    %v588 = vunpack.c.l.b16 %v133
    %v589 = vunpack.c.h.b16 %v133
    %v590 = vunpack.c.l.b16 %v134
    %v591 = vunpack.c.h.b16 %v134
    %v592 = vunpack.c.l.b16 %v135
    %v593 = vunpack.c.h.b16 %v135
    %v594 = vunpack.c.l.b16 %v136
    %v595 = vunpack.c.h.b16 %v136
    %v596 = vunpack.c.l.b16 %v137
    %v597 = vunpack.c.h.b16 %v137
    %v598 = vunpack.c.l.b16 %v138
    %v599 = vunpack.c.h.b16 %v138
    %v600 = vunpack.c.l.b16 %v139
    %v601 = vunpack.c.h.b16 %v139
    %v602 = vunpack.c.l.b16 %v140
    %v603 = vunpack.c.h.b16 %v140
    %v604 = vunpack.c.l.b16 %v141
    %v605 = vunpack.c.h.b16 %v141
    %v606 = vunpack.c.l.b16 %v142
    %v607 = vunpack.c.h.b16 %v142
    %v608 = vunpack.c.l.b16 %v143
    %v609 = vunpack.c.h.b16 %v143
    %v610 = vunpack.c.l.b16 %v144
    %v611 = vunpack.c.h.b16 %v144
    %v612 = vunpack.c.l.b16 %v145
    %v613 = vunpack.c.h.b16 %v145
    %v614 = vunpack.c.l.b16 %v146
    %v615 = vunpack.c.h.b16 %v146
    %v616 = vunpack.c.l.b16 %v147
    %v617 = vunpack.c.h.b16 %v147
    %v618 = vunpack.c.l.b16 %v148
    %v619 = vunpack.c.h.b16 %v148
    %v620 = vunpack.c.l.b16 %v149
    %v621 = vunpack.c.h.b16 %v149
    %v622 = vunpack.c.l.b16 %v150
    %v623 = vunpack.c.h.b16 %v150
    %v624 = vunpack.c.l.b16 %v151
    %v625 = vunpack.c.h.b16 %v151
    %v626 = vunpack.c.l.b16 %v152
    %v627 = vunpack.c.h.b16 %v152
    %v628 = vunpack.c.l.b16 %v153
    %v629 = vunpack.c.h.b16 %v153
    %v630 = vunpack.c.l.b16 %v154
    %v631 = vunpack.c.h.b16 %v154
    %v632 = vunpack.c.l.b16 %v155
    %v633 = vunpack.c.h.b16 %v155
    %v634 = vunpack.c.l.b16 %v156
    %v635 = vunpack.c.h.b16 %v156
    %v636 = vunpack.c.l.b16 %v157
    %v637 = vunpack.c.h.b16 %v157
    %v638 = vunpack.c.l.b16 %v158
    %v639 = vunpack.c.h.b16 %v158
    %v640 = vunpack.c.l.b16 %v159
    %v641 = vunpack.c.h.b16 %v159
    %v642 = vunpack.c.l.b16 %v160
    %v643 = vunpack.c.h.b16 %v160
    %v644 = vunpack.c.l.b16 %v161
    %v645 = vunpack.c.h.b16 %v161
    %v646 = vunpack.c.l.b16 %v162
    %v647 = vunpack.c.h.b16 %v162
    %v648 = vunpack.c.l.b16 %v163
    %v649 = vunpack.c.h.b16 %v163
    %v650 = vunpack.c.l.b16 %v164
    %v651 = vunpack.c.h.b16 %v164
    %v652 = vunpack.c.l.b16 %v165
    %v653 = vunpack.c.h.b16 %v165
    %v654 = vunpack.c.l.b16 %v166
    %v655 = vunpack.c.h.b16 %v166
    %v656 = vunpack.c.l.b16 %v167
    %v657 = vunpack.c.h.b16 %v167
    %v658 = vunpack.c.l.b16 %v168
    %v659 = vunpack.c.h.b16 %v168
    %v660 = vunpack.c.l.b16 %v169
    %v661 = vunpack.c.h.b16 %v169
    %v662 = vunpack.c.l.b16 %v170
    %v663 = vunpack.c.h.b16 %v170
    %v664 = vunpack.c.l.b16 %v171
    %v665 = vunpack.c.h.b16 %v171
    %v666 = vunpack.c.l.b16 %v172
    %v667 = vunpack.c.h.b16 %v172
    %v668 = vunpack.c.l.b16 %v173
    %v669 = vunpack.c.h.b16 %v173
    %v670 = vunpack.c.l.b16 %v174
    %v671 = vunpack.c.h.b16 %v174
    %v672 = vunpack.c.l.b16 %v175
    %v673 = vunpack.c.h.b16 %v175
    %v674 = vunpack.c.l.b16 %v176
    %v675 = vunpack.c.h.b16 %v176
    %v676 = vunpack.c.l.b16 %v177
    %v677 = vunpack.c.h.b16 %v177
    %v678 = vunpack.c.l.b16 %v178
    %v679 = vunpack.c.h.b16 %v178
    %v680 = vunpack.c.l.b16 %v179
    %v681 = vunpack.c.h.b16 %v179
    %v682 = vunpack.c.l.b16 %v180
    %v683 = vunpack.c.h.b16 %v180
    %v684 = vunpack.c.l.b16 %v181
    %v685 = vunpack.c.h.b16 %v181
    %v686 = vunpack.c.l.b16 %v182
    %v687 = vunpack.c.h.b16 %v182
    %v688 = vunpack.c.l.b16 %v183
    %v689 = vunpack.c.h.b16 %v183
    %v690 = vunpack.c.l.b16 %v184
    %v691 = vunpack.c.h.b16 %v184
    %v692 = vunpack.c.l.b16 %v185
    %v693 = vunpack.c.h.b16 %v185
    %v694 = vunpack.c.l.b16 %v186
    %v695 = vunpack.c.h.b16 %v186
    %v696 = vunpack.c.l.b16 %v187
    %v697 = vunpack.c.h.b16 %v187
    %v698 = vunpack.c.l.b16 %v188
    %v699 = vunpack.c.h.b16 %v188
    %v700 = vunpack.c.l.b16 %v189
    %v701 = vunpack.c.h.b16 %v189
    %v702 = vunpack.c.l.b16 %v190
    %v703 = vunpack.c.h.b16 %v190
    %v704 = vunpack.c.l.b16 %v191
    %v705 = vunpack.c.h.b16 %v191
    %v706 = vunpack.c.l.b16 %v192
    %v707 = vunpack.c.h.b16 %v192
    %v708 = vunpack.c.l.b16 %v193
    %v709 = vunpack.c.h.b16 %v193
    %v710 = vunpack.c.l.b16 %v194
    %v711 = vunpack.c.h.b16 %v194
    %v712 = vunpack.c.l.b16 %v195
    %v713 = vunpack.c.h.b16 %v195
    %v714 = vunpack.c.l.b16 %v196
    %v715 = vunpack.c.h.b16 %v196
    %v716 = vunpack.c.l.b16 %v197
    %v717 = vunpack.c.h.b16 %v197
    %v718 = vunpack.c.l.b16 %v198
    %v719 = vunpack.c.h.b16 %v198
    %v720 = vunpack.c.l.b16 %v199
    %v721 = vunpack.c.h.b16 %v199
    %v722 = vunpack.c.l.b16 %v200
    %v723 = vunpack.c.h.b16 %v200
    %v724 = vunpack.c.l.b16 %v201
    %v725 = vunpack.c.h.b16 %v201
    %v726 = vunpack.c.l.b16 %v202
    %v727 = vunpack.c.h.b16 %v202
    %v728 = vunpack.c.l.b16 %v203
    %v729 = vunpack.c.h.b16 %v203
    %v730 = vunpack.c.l.b16 %v204
    %v731 = vunpack.c.h.b16 %v204
    %v732 = vunpack.c.l.b16 %v205
    %v733 = vunpack.c.h.b16 %v205
    %v734 = vunpack.c.l.b16 %v206
    %v735 = vunpack.c.h.b16 %v206
    %v736 = vunpack.c.l.b16 %v207
    %v737 = vunpack.c.h.b16 %v207
    %v738 = vunpack.c.l.b16 %v208
    %v739 = vunpack.c.h.b16 %v208
    %v740 = vunpack.c.l.b16 %v209
    %v741 = vunpack.c.h.b16 %v209
    %v742 = vunpack.c.l.b16 %v210
    %v743 = vunpack.c.h.b16 %v210
    %v744 = vunpack.c.l.b16 %v211
    %v745 = vunpack.c.h.b16 %v211
    %v746 = vunpack.c.l.b16 %v212
    %v747 = vunpack.c.h.b16 %v212
    %v748 = vunpack.c.l.b16 %v213
    %v749 = vunpack.c.h.b16 %v213
    %v750 = vunpack.c.l.b16 %v214
    %v751 = vunpack.c.h.b16 %v214
    %v752 = vunpack.c.l.b16 %v215
    %v753 = vunpack.c.h.b16 %v215
    %v754 = vunpack.c.l.b16 %v216
    %v755 = vunpack.c.h.b16 %v216
    %v756 = vunpack.c.l.b16 %v217
    %v757 = vunpack.c.h.b16 %v217
    %v758 = vunpack.c.l.b16 %v218
    %v759 = vunpack.c.h.b16 %v218
    %v760 = vunpack.c.l.b16 %v219
    %v761 = vunpack.c.h.b16 %v219
    %v762 = vunpack.c.l.b16 %v220
    %v763 = vunpack.c.h.b16 %v220
    %v764 = vunpack.c.l.b16 %v221
    %v765 = vunpack.c.h.b16 %v221
    %v766 = vunpack.c.l.b16 %v222
    %v767 = vunpack.c.h.b16 %v222
    %v768 = vunpack.c.l.b16 %v223
    %v769 = vunpack.c.h.b16 %v223
    %v770 = vunpack.c.l.b16 %v224
    %v771 = vunpack.c.h.b16 %v224
    %v772 = vunpack.c.l.b16 %v225
    %v773 = vunpack.c.h.b16 %v225
    %v774 = vunpack.c.l.b16 %v226
    %v775 = vunpack.c.h.b16 %v226
    %v776 = vunpack.c.l.b16 %v227
    %v777 = vunpack.c.h.b16 %v227
    %v778 = vunpack.c.l.b16 %v228
    %v779 = vunpack.c.h.b16 %v228
    %v780 = vunpack.c.l.b16 %v229
    %v781 = vunpack.c.h.b16 %v229
    %v782 = vunpack.c.l.b16 %v230
    %v783 = vunpack.c.h.b16 %v230
    %v784 = vunpack.c.l.b16 %v231
    %v785 = vunpack.c.h.b16 %v231
    %v786 = vunpack.c.l.b16 %v232
    %v787 = vunpack.c.h.b16 %v232
    %v788 = vunpack.c.l.b16 %v233
    %v789 = vunpack.c.h.b16 %v233
    %v790 = vunpack.c.l.b16 %v234
    %v791 = vunpack.c.h.b16 %v234
    %v792 = vunpack.c.l.b16 %v235
    %v793 = vunpack.c.h.b16 %v235
    %v794 = vunpack.c.l.b16 %v236
    %v795 = vunpack.c.h.b16 %v236
    %v796 = vunpack.c.l.b16 %v237
    %v797 = vunpack.c.h.b16 %v237
    %v798 = vunpack.c.l.b16 %v238
    %v799 = vunpack.c.h.b16 %v238
    %v800 = vunpack.c.l.b16 %v239
    %v801 = vunpack.c.h.b16 %v239
    %v802 = vunpack.c.l.b16 %v240
    %v803 = vunpack.c.h.b16 %v240
    %v804 = vunpack.c.l.b16 %v241
    %v805 = vunpack.c.h.b16 %v241
    %v806 = vunpack.c.l.b16 %v242
    %v807 = vunpack.c.h.b16 %v242
    %v808 = vunpack.c.l.b16 %v243
    %v809 = vunpack.c.h.b16 %v243
    %v810 = vunpack.c.l.b16 %v244
    %v811 = vunpack.c.h.b16 %v244
    %v812 = vunpack.c.l.b16 %v245
    %v813 = vunpack.c.h.b16 %v245
    %v814 = vunpack.c.l.b16 %v246
    %v815 = vunpack.c.h.b16 %v246
    %v816 = vunpack.c.l.b16 %v247
    %v817 = vunpack.c.h.b16 %v247
    %v818 = vunpack.c.l.b16 %v248
    %v819 = vunpack.c.h.b16 %v248
    %v820 = vunpack.c.l.b16 %v249
    %v821 = vunpack.c.h.b16 %v249
    %v822 = vunpack.c.l.b16 %v250
    %v823 = vunpack.c.h.b16 %v250
    %v824 = vunpack.c.l.b16 %v251
    %v825 = vunpack.c.h.b16 %v251
    %v826 = vunpack.c.l.b16 %v252
    %v827 = vunpack.c.h.b16 %v252
    %v828 = vunpack.c.l.b16 %v253
    %v829 = vunpack.c.h.b16 %v253
    %v830 = vunpack.c.l.b16 %v254
    %v831 = vunpack.c.h.b16 %v254
    %v832 = vunpack.c.l.b16 %v255
    %v833 = vunpack.c.h.b16 %v255
    %v834 = vunpack.c.l.b16 %v256
    %v835 = vunpack.c.h.b16 %v256
    %v836 = vunpack.c.l.b16 %v257
    %v837 = vunpack.c.h.b16 %v257
    %v838 = vunpack.c.l.b16 %v258
    %v839 = vunpack.c.h.b16 %v258
    %v840 = vunpack.c.l.b16 %v259
    %v841 = vunpack.c.h.b16 %v259
    %v842 = vunpack.c.l.b16 %v260
    %v843 = vunpack.c.h.b16 %v260
    %v844 = vunpack.c.l.b16 %v261
    %v845 = vunpack.c.h.b16 %v261
    %v846 = vunpack.c.l.b16 %v262
    %v847 = vunpack.c.h.b16 %v262
    %v848 = vunpack.c.l.b16 %v263
    %v849 = vunpack.c.h.b16 %v263
    %v850 = vunpack.c.l.b16 %v264
    %v851 = vunpack.c.h.b16 %v264
    %v852 = vunpack.c.l.b16 %v265
    %v853 = vunpack.c.h.b16 %v265
    %v854 = vunpack.c.l.b16 %v266
    %v855 = vunpack.c.h.b16 %v266
    %v856 = vunpack.c.l.b16 %v267
    %v857 = vunpack.c.h.b16 %v267
    %v858 = vunpack.c.l.b16 %v268
    %v859 = vunpack.c.h.b16 %v268
    %v860 = vunpack.c.l.b16 %v269
    %v861 = vunpack.c.h.b16 %v269
    %v862 = vunpack.c.l.b16 %v270
    %v863 = vunpack.c.h.b16 %v270
    %v864 = vunpack.c.l.b16 %v271
    %v865 = vunpack.c.h.b16 %v271
    %v866 = vunpack.c.l.b16 %v272
    %v867 = vunpack.c.h.b16 %v272
    %v868 = vunpack.c.l.b16 %v273
    %v869 = vunpack.c.h.b16 %v273
    %v870 = vunpack.c.l.b16 %v274
    %v871 = vunpack.c.h.b16 %v274
    %v872 = vunpack.c.l.b16 %v275
    %v873 = vunpack.c.h.b16 %v275
    %v874 = vunpack.c.l.b16 %v276
    %v875 = vunpack.c.h.b16 %v276
    %v876 = vunpack.c.l.b16 %v277
    %v877 = vunpack.c.h.b16 %v277
    %v878 = vunpack.c.l.b16 %v278
    %v879 = vunpack.c.h.b16 %v278
    %v880 = vunpack.c.l.b16 %v279
    %v881 = vunpack.c.h.b16 %v279
    %v882 = vunpack.c.l.b16 %v280
    %v883 = vunpack.c.h.b16 %v280
    %v884 = vunpack.c.l.b16 %v281
    %v885 = vunpack.c.h.b16 %v281
    %v886 = vunpack.c.l.b16 %v282
    %v887 = vunpack.c.h.b16 %v282
    %v888 = vunpack.c.l.b16 %v283
    %v889 = vunpack.c.h.b16 %v283
    %v890 = vunpack.c.l.b16 %v284
    %v891 = vunpack.c.h.b16 %v284
    %v892 = vunpack.c.l.b16 %v285
    %v893 = vunpack.c.h.b16 %v285
    %v894 = vunpack.c.l.b16 %v286
    %v895 = vunpack.c.h.b16 %v286
    %v896 = vunpack.c.l.b16 %v287
    %v897 = vunpack.c.h.b16 %v287
    %v898 = vpack.c.b16 %v510, %v506
    %v899 = vpack.c.b16 %v511, %v507
    %v900 = vpack.c.b16 %v512, %v508
    %v901 = vpack.c.b16 %v513, %v509
    %v902 = vpack.c.b16 %v518, %v514
    %v903 = vpack.c.b16 %v519, %v515
    %v904 = vpack.c.b16 %v520, %v516
    %v905 = vpack.c.b16 %v521, %v517
    %v906 = vpack.c.b16 %v526, %v522
    %v907 = vpack.c.b16 %v527, %v523
    %v908 = vpack.c.b16 %v528, %v524
    %v909 = vpack.c.b16 %v529, %v525
    %v910 = vpack.c.b16 %v534, %v530
    %v911 = vpack.c.b16 %v535, %v531
    %v912 = vpack.c.b16 %v536, %v532
    %v913 = vpack.c.b16 %v537, %v533
    %v914 = vpack.c.b16 %v542, %v538
    %v915 = vpack.c.b16 %v543, %v539
    %v916 = vpack.c.b16 %v544, %v540
    %v917 = vpack.c.b16 %v545, %v541
    %v918 = vpack.c.b16 %v550, %v546
    %v919 = vpack.c.b16 %v551, %v547
    %v920 = vpack.c.b16 %v552, %v548
    %v921 = vpack.c.b16 %v553, %v549
    %v922 = vpack.c.b16 %v558, %v554
    %v923 = vpack.c.b16 %v559, %v555
    %v924 = vpack.c.b16 %v560, %v556
    %v925 = vpack.c.b16 %v561, %v557
    %v926 = vpack.c.b16 %v566, %v562
    %v927 = vpack.c.b16 %v567, %v563
    %v928 = vpack.c.b16 %v568, %v564
    %v929 = vpack.c.b16 %v569, %v565
    %v930 = vpack.c.b16 %v574, %v570
    %v931 = vpack.c.b16 %v575, %v571
    %v932 = vpack.c.b16 %v576, %v572
    %v933 = vpack.c.b16 %v577, %v573
    %v934 = vpack.c.b16 %v582, %v578
    %v935 = vpack.c.b16 %v583, %v579
    %v936 = vpack.c.b16 %v584, %v580
    %v937 = vpack.c.b16 %v585, %v581
    %v938 = vpack.c.b16 %v590, %v586
    %v939 = vpack.c.b16 %v591, %v587
    %v940 = vpack.c.b16 %v592, %v588
    %v941 = vpack.c.b16 %v593, %v589
    %v942 = vpack.c.b16 %v598, %v594
    %v943 = vpack.c.b16 %v599, %v595
    %v944 = vpack.c.b16 %v600, %v596
    %v945 = vpack.c.b16 %v601, %v597
    %v946 = vpack.c.b16 %v606, %v602
    %v947 = vpack.c.b16 %v607, %v603
    %v948 = vpack.c.b16 %v608, %v604
    %v949 = vpack.c.b16 %v609, %v605
    %v950 = vpack.c.b16 %v614, %v610
    %v951 = vpack.c.b16 %v615, %v611
    %v952 = vpack.c.b16 %v616, %v612
    %v953 = vpack.c.b16 %v617, %v613
    %v954 = vpack.c.b16 %v622, %v618
    %v955 = vpack.c.b16 %v623, %v619
    %v956 = vpack.c.b16 %v624, %v620
    %v957 = vpack.c.b16 %v625, %v621
    %v958 = vpack.c.b16 %v630, %v626
    %v959 = vpack.c.b16 %v631, %v627
    %v960 = vpack.c.b16 %v632, %v628
    %v961 = vpack.c.b16 %v633, %v629
    %v962 = vpack.c.b16 %v638, %v634
    %v963 = vpack.c.b16 %v639, %v635
    %v964 = vpack.c.b16 %v640, %v636
    %v965 = vpack.c.b16 %v641, %v637
    %v966 = vpack.c.b16 %v646, %v642
    %v967 = vpack.c.b16 %v647, %v643
    %v968 = vpack.c.b16 %v648, %v644
    %v969 = vpack.c.b16 %v649, %v645
    %v970 = vpack.c.b16 %v654, %v650
    %v971 = vpack.c.b16 %v655, %v651
    %v972 = vpack.c.b16 %v656, %v652
    %v973 = vpack.c.b16 %v657, %v653
    %v974 = vpack.c.b16 %v662, %v658
    %v975 = vpack.c.b16 %v663, %v659
    %v976 = vpack.c.b16 %v664, %v660
    %v977 = vpack.c.b16 %v665, %v661
    %v978 = vpack.c.b16 %v670, %v666
    %v979 = vpack.c.b16 %v671, %v667
    %v980 = vpack.c.b16 %v672, %v668
    %v981 = vpack.c.b16 %v673, %v669
    %v982 = vpack.c.b16 %v678, %v674
    %v983 = vpack.c.b16 %v679, %v675
    %v984 = vpack.c.b16 %v680, %v676
    %v985 = vpack.c.b16 %v681, %v677
    %v986 = vpack.c.b16 %v686, %v682
    %v987 = vpack.c.b16 %v687, %v683
    %v988 = vpack.c.b16 %v688, %v684
    %v989 = vpack.c.b16 %v689, %v685
    %v990 = vpack.c.b16 %v694, %v690
    %v991 = vpack.c.b16 %v695, %v691
    %v992 = vpack.c.b16 %v696, %v692
    %v993 = vpack.c.b16 %v697, %v693
    %v994 = vpack.c.b16 %v702, %v698
    %v995 = vpack.c.b16 %v703, %v699
    %v996 = vpack.c.b16 %v704, %v700
    %v997 = vpack.c.b16 %v705, %v701
    %v998 = vpack.c.b16 %v710, %v706
    %v999 = vpack.c.b16 %v711, %v707
    %v1000 = vpack.c.b16 %v712, %v708
    %v1001 = vpack.c.b16 %v713, %v709
    %v1002 = vpack.c.b16 %v718, %v714
    %v1003 = vpack.c.b16 %v719, %v715
    %v1004 = vpack.c.b16 %v720, %v716
    %v1005 = vpack.c.b16 %v721, %v717
    %v1006 = vpack.c.b16 %v726, %v722
    %v1007 = vpack.c.b16 %v727, %v723
    %v1008 = vpack.c.b16 %v728, %v724
    %v1009 = vpack.c.b16 %v729, %v725
    %v1010 = vpack.c.b16 %v734, %v730
    %v1011 = vpack.c.b16 %v735, %v731
    %v1012 = vpack.c.b16 %v736, %v732
    %v1013 = vpack.c.b16 %v737, %v733
    %v1014 = vpack.c.b16 %v742, %v738
    %v1015 = vpack.c.b16 %v743, %v739
    %v1016 = vpack.c.b16 %v744, %v740
    %v1017 = vpack.c.b16 %v745, %v741
    %v1018 = vpack.c.b16 %v750, %v746
    %v1019 = vpack.c.b16 %v751, %v747
    %v1020 = vpack.c.b16 %v752, %v748
    %v1021 = vpack.c.b16 %v753, %v749
    %v1022 = vpack.c.b16 %v758, %v754
    %v1023 = vpack.c.b16 %v759, %v755
    %v1024 = vpack.c.b16 %v760, %v756
    %v1025 = vpack.c.b16 %v761, %v757
    %v1026 = vpack.c.b16 %v766, %v762
    %v1027 = vpack.c.b16 %v767, %v763
    %v1028 = vpack.c.b16 %v768, %v764
    %v1029 = vpack.c.b16 %v769, %v765
    %v1030 = vpack.c.b16 %v774, %v770
    %v1031 = vpack.c.b16 %v775, %v771
    %v1032 = vpack.c.b16 %v776, %v772
    %v1033 = vpack.c.b16 %v777, %v773
    %v1034 = vpack.c.b16 %v782, %v778
    %v1035 = vpack.c.b16 %v783, %v779
    %v1036 = vpack.c.b16 %v784, %v780
    %v1037 = vpack.c.b16 %v785, %v781
    %v1038 = vpack.c.b16 %v790, %v786
    %v1039 = vpack.c.b16 %v791, %v787
    %v1040 = vpack.c.b16 %v792, %v788
    %v1041 = vpack.c.b16 %v793, %v789
    %v1042 = vpack.c.b16 %v798, %v794
    %v1043 = vpack.c.b16 %v799, %v795
    %v1044 = vpack.c.b16 %v800, %v796
    %v1045 = vpack.c.b16 %v801, %v797
    %v1046 = vpack.c.b16 %v806, %v802
    %v1047 = vpack.c.b16 %v807, %v803
    %v1048 = vpack.c.b16 %v808, %v804
    %v1049 = vpack.c.b16 %v809, %v805
    %v1050 = vpack.c.b16 %v814, %v810
    %v1051 = vpack.c.b16 %v815, %v811
    %v1052 = vpack.c.b16 %v816, %v812
    %v1053 = vpack.c.b16 %v817, %v813
    %v1054 = vpack.c.b16 %v822, %v818
    %v1055 = vpack.c.b16 %v823, %v819
    %v1056 = vpack.c.b16 %v824, %v820
    %v1057 = vpack.c.b16 %v825, %v821
    %v1058 = vpack.c.b16 %v830, %v826
    %v1059 = vpack.c.b16 %v831, %v827
    %v1060 = vpack.c.b16 %v832, %v828
    %v1061 = vpack.c.b16 %v833, %v829
    %v1062 = vpack.c.b16 %v838, %v834
    %v1063 = vpack.c.b16 %v839, %v835
    %v1064 = vpack.c.b16 %v840, %v836
    %v1065 = vpack.c.b16 %v841, %v837
    %v1066 = vpack.c.b16 %v846, %v842
    %v1067 = vpack.c.b16 %v847, %v843
    %v1068 = vpack.c.b16 %v848, %v844
    %v1069 = vpack.c.b16 %v849, %v845
    %v1070 = vpack.c.b16 %v854, %v850
    %v1071 = vpack.c.b16 %v855, %v851
    %v1072 = vpack.c.b16 %v856, %v852
    %v1073 = vpack.c.b16 %v857, %v853
    %v1074 = vpack.c.b16 %v862, %v858
    %v1075 = vpack.c.b16 %v863, %v859
    %v1076 = vpack.c.b16 %v864, %v860
    %v1077 = vpack.c.b16 %v865, %v861
    %v1078 = vpack.c.b16 %v870, %v866
    %v1079 = vpack.c.b16 %v871, %v867
    %v1080 = vpack.c.b16 %v872, %v868
    %v1081 = vpack.c.b16 %v873, %v869
    %v1082 = vpack.c.b16 %v878, %v874
    %v1083 = vpack.c.b16 %v879, %v875
    %v1084 = vpack.c.b16 %v880, %v876
    %v1085 = vpack.c.b16 %v881, %v877
    %v1086 = vpack.c.b16 %v886, %v882
    %v1087 = vpack.c.b16 %v887, %v883
    %v1088 = vpack.c.b16 %v888, %v884
    %v1089 = vpack.c.b16 %v889, %v885
    %v1090 = vpack.c.b16 %v894, %v890
    %v1091 = vpack.c.b16 %v895, %v891
    %v1092 = vpack.c.b16 %v896, %v892
    %v1093 = vpack.c.b16 %v897, %v893
    %vm1290 = vcmask 130048
    %v1292 = vsel %vm1290, %v91, 0
    %1294 = vmatprep.subr.bf16.mxu0 %v899
    %1295 = vmatpush1.bf16.msra.mxu0 %v898
    %1296 = vmatprep.subr.bf16.mxu0 %v903
    %1297 = vmatpush1.bf16.msra.mxu0 %v902
    %1298 = vmatprep.subr.bf16.mxu0 %v907
    %1299 = vmatpush1.bf16.msra.mxu0 %v906
    %1300 = vmatprep.subr.bf16.mxu0 %v911
    %1301 = vmatpush1.bf16.msra.mxu0 %v910
    %1302 = vmatprep.subr.bf16.mxu0 %v915
    %1303 = vmatpush1.bf16.msra.mxu0 %v914
    %1304 = vmatprep.subr.bf16.mxu0 %v919
    %1305 = vmatpush1.bf16.msra.mxu0 %v918
    %1306 = vmatprep.subr.bf16.mxu0 %v923
    %1307 = vmatpush1.bf16.msra.mxu0 %v922
    %1308 = vmatprep.subr.bf16.mxu0 %v927
    %1309 = vmatpush1.bf16.msra.mxu0 %v926
    %1310 = vmatprep.subr.bf16.mxu0 %v931
    %1311 = vmatpush1.bf16.msra.mxu0 %v930
    %1312 = vmatprep.subr.bf16.mxu0 %v935
    %1313 = vmatpush1.bf16.msra.mxu0 %v934
    %1314 = vmatprep.subr.bf16.mxu0 %v939
    %1315 = vmatpush1.bf16.msra.mxu0 %v938
    %1316 = vmatprep.subr.bf16.mxu0 %v943
    %1317 = vmatpush1.bf16.msra.mxu0 %v942
    %1318 = vmatprep.subr.bf16.mxu0 %v947
    %1319 = vmatpush1.bf16.msra.mxu0 %v946
    %1320 = vmatprep.subr.bf16.mxu0 %v951
    %1321 = vmatpush1.bf16.msra.mxu0 %v950
    %1322 = vmatprep.subr.bf16.mxu0 %v955
    %1323 = vmatpush1.bf16.msra.mxu0 %v954
    %1324 = vmatprep.subr.bf16.mxu0 %v959
    %1325 = vmatpush1.bf16.msra.mxu0 %v958
    %1326 = vmatprep.mubr.bf16.mxu0 %v86
    %1327 = vmatmul.mubr.bf16.gmra.mrb[0].mxu0 %v85
    %v1328 = vpop.f32.mrb[0].mxu0
    %v1329 = vadd.f32 %v293, %v1328
    %v1330 = vpop.f32.mrb[0].mxu0
    %v1331 = vadd.f32 %v297, %v1330
    %v1332 = vpop.f32.mrb[0].mxu0
    %v1333 = vadd.f32 %v293, %v1332
    %v1334 = vpop.f32.mrb[0].mxu0
    %v1335 = vadd.f32 %v297, %v1334
    %1336 = vdwg.mxu0
    %1337 = vmatprep.subr.bf16.mxu0 %v963
    %1338 = vmatpush1.bf16.msra.mxu0 %v962
    %1339 = vmatprep.subr.bf16.mxu0 %v967
    %1340 = vmatpush1.bf16.msra.mxu0 %v966
    %1341 = vmatprep.subr.bf16.mxu0 %v971
    %1342 = vmatpush1.bf16.msra.mxu0 %v970
    %1343 = vmatprep.subr.bf16.mxu0 %v975
    %1344 = vmatpush1.bf16.msra.mxu0 %v974
    %1345 = vmatprep.subr.bf16.mxu0 %v979
    %1346 = vmatpush1.bf16.msra.mxu0 %v978
    %1347 = vmatprep.subr.bf16.mxu0 %v983
    %1348 = vmatpush1.bf16.msra.mxu0 %v982
    %1349 = vmatprep.subr.bf16.mxu0 %v987
    %1350 = vmatpush1.bf16.msra.mxu0 %v986
    %1351 = vmatprep.subr.bf16.mxu0 %v991
    %1352 = vmatpush1.bf16.msra.mxu0 %v990
    %1353 = vmatprep.subr.bf16.mxu0 %v995
    %1354 = vmatpush1.bf16.msra.mxu0 %v994
    %1355 = vmatprep.subr.bf16.mxu0 %v999
    %1356 = vmatpush1.bf16.msra.mxu0 %v998
    %1357 = vmatprep.subr.bf16.mxu0 %v1003
    %1358 = vmatpush1.bf16.msra.mxu0 %v1002
    %1359 = vmatprep.subr.bf16.mxu0 %v1007
    %1360 = vmatpush1.bf16.msra.mxu0 %v1006
    %1361 = vmatprep.subr.bf16.mxu0 %v1011
    %1362 = vmatpush1.bf16.msra.mxu0 %v1010
    %1363 = vmatprep.subr.bf16.mxu0 %v1015
    %1364 = vmatpush1.bf16.msra.mxu0 %v1014
    %1365 = vmatprep.subr.bf16.mxu0 %v1019
    %1366 = vmatpush1.bf16.msra.mxu0 %v1018
    %1367 = vmatprep.subr.bf16.mxu0 %v1023
    %1368 = vmatpush1.bf16.msra.mxu0 %v1022
    %1369 = vmatprep.mubr.bf16.mxu0 %v88
    %1370 = vmatmul.mubr.bf16.gmra.mrb[0].mxu0 %v87
    %v1371 = vpop.f32.mrb[0].mxu0
    %v1372 = vadd.f32 %v1329, %v1371
    %v1373 = vpop.f32.mrb[0].mxu0
    %v1374 = vadd.f32 %v1331, %v1373
    %v1375 = vpop.f32.mrb[0].mxu0
    %v1376 = vadd.f32 %v1333, %v1375
    %v1377 = vpop.f32.mrb[0].mxu0
    %v1378 = vadd.f32 %v1335, %v1377
    %1379 = vdwg.mxu0
    %1380 = vmatprep.subr.bf16.mxu0 %v1027
    %1381 = vmatpush1.bf16.msra.mxu0 %v1026
    %1382 = vmatprep.subr.bf16.mxu0 %v1031
    %1383 = vmatpush1.bf16.msra.mxu0 %v1030
    %1384 = vmatprep.subr.bf16.mxu0 %v1035
    %1385 = vmatpush1.bf16.msra.mxu0 %v1034
    %1386 = vmatprep.subr.bf16.mxu0 %v1039
    %1387 = vmatpush1.bf16.msra.mxu0 %v1038
    %1388 = vmatprep.subr.bf16.mxu0 %v1043
    %1389 = vmatpush1.bf16.msra.mxu0 %v1042
    %1390 = vmatprep.subr.bf16.mxu0 %v1047
    %1391 = vmatpush1.bf16.msra.mxu0 %v1046
    %1392 = vmatprep.subr.bf16.mxu0 %v1051
    %1393 = vmatpush1.bf16.msra.mxu0 %v1050
    %1394 = vmatprep.subr.bf16.mxu0 %v1055
    %1395 = vmatpush1.bf16.msra.mxu0 %v1054
    %1396 = vmatprep.subr.bf16.mxu0 %v1059
    %1397 = vmatpush1.bf16.msra.mxu0 %v1058
    %1398 = vmatprep.subr.bf16.mxu0 %v1063
    %1399 = vmatpush1.bf16.msra.mxu0 %v1062
    %1400 = vmatprep.subr.bf16.mxu0 %v1067
    %1401 = vmatpush1.bf16.msra.mxu0 %v1066
    %1402 = vmatprep.subr.bf16.mxu0 %v1071
    %1403 = vmatpush1.bf16.msra.mxu0 %v1070
    %1404 = vmatprep.subr.bf16.mxu0 %v1075
    %1405 = vmatpush1.bf16.msra.mxu0 %v1074
    %1406 = vmatprep.subr.bf16.mxu0 %v1079
    %1407 = vmatpush1.bf16.msra.mxu0 %v1078
    %1408 = vmatprep.subr.bf16.mxu0 %v1083
    %1409 = vmatpush1.bf16.msra.mxu0 %v1082
    %1410 = vmatprep.subr.bf16.mxu0 %v1087
    %1411 = vmatpush1.bf16.msra.mxu0 %v1086
    %1412 = vmatprep.mubr.bf16.mxu0 %v90
    %1413 = vmatmul.mubr.bf16.gmra.mrb[0].mxu0 %v89
    %v1414 = vpop.f32.mrb[0].mxu0
    %v1415 = vadd.f32 %v1372, %v1414
    %v1416 = vpop.f32.mrb[0].mxu0
    %v1417 = vadd.f32 %v1374, %v1416
    %v1418 = vpop.f32.mrb[0].mxu0
    %v1419 = vadd.f32 %v1376, %v1418
    %v1420 = vpop.f32.mrb[0].mxu0
    %v1421 = vadd.f32 %v1378, %v1420
    %1422 = vdwg.mxu0
    %1423 = vmatprep.subr.bf16.mxu0 %v1091
    %1424 = vmatpush1.bf16.msra.mxu0 %v1090
    %1425 = vmatprep.subr.bf16.mxu0 0
    %1426 = vmatpush1.bf16.msra.mxu0 0
    %1427 = vmatprep.subr.bf16.mxu0 0
    %1428 = vmatpush1.bf16.msra.mxu0 0
    %1429 = vmatprep.subr.bf16.mxu0 0
    %1430 = vmatpush1.bf16.msra.mxu0 0
    %1431 = vmatprep.subr.bf16.mxu0 0
    %1432 = vmatpush1.bf16.msra.mxu0 0
    %1433 = vmatprep.subr.bf16.mxu0 0
    %1434 = vmatpush1.bf16.msra.mxu0 0
    %1435 = vmatprep.subr.bf16.mxu0 0
    %1436 = vmatpush1.bf16.msra.mxu0 0
    %1437 = vmatprep.subr.bf16.mxu0 0
    %1438 = vmatpush1.bf16.msra.mxu0 0
    %1439 = vmatprep.subr.bf16.mxu0 0
    %1440 = vmatpush1.bf16.msra.mxu0 0
    %1441 = vmatprep.subr.bf16.mxu0 0
    %1442 = vmatpush1.bf16.msra.mxu0 0
    %1443 = vmatprep.subr.bf16.mxu0 0
    %1444 = vmatpush1.bf16.msra.mxu0 0
    %1445 = vmatprep.subr.bf16.mxu0 0
    %1446 = vmatpush1.bf16.msra.mxu0 0
    %1447 = vmatprep.subr.bf16.mxu0 0
    %1448 = vmatpush1.bf16.msra.mxu0 0
    %1449 = vmatprep.subr.bf16.mxu0 0
    %1450 = vmatpush1.bf16.msra.mxu0 0
    %1451 = vmatprep.subr.bf16.mxu0 0
    %1452 = vmatpush1.bf16.msra.mxu0 0
    %1453 = vmatprep.subr.bf16.mxu0 0
    %1454 = vmatpush1.bf16.msra.mxu0 0
    %1455 = vmatprep.mubr.bf16.mxu0 0
    %1456 = vmatmul.mubr.bf16.gmra.mrb[0].mxu0 %v1292
    %v1457 = vpop.f32.mrb[0].mxu0
    %v1458 = vadd.f32 %v1415, %v1457
    %v1459 = vpop.f32.mrb[0].mxu0
    %v1460 = vadd.f32 %v1417, %v1459
    %v1461 = vpop.f32.mrb[0].mxu0
    %v1462 = vadd.f32 %v1419, %v1461
    %v1463 = vpop.f32.mrb[0].mxu0
    %v1464 = vadd.f32 %v1421, %v1463
    %1465 = vdwg.mxu0
    %1466 = vmatprep.subr.bf16.mxu0 %v901
    %1467 = vmatpush1.bf16.msra.mxu0 %v900
    %1468 = vmatprep.subr.bf16.mxu0 %v905
    %1469 = vmatpush1.bf16.msra.mxu0 %v904
    %1470 = vmatprep.subr.bf16.mxu0 %v909
    %1471 = vmatpush1.bf16.msra.mxu0 %v908
    %1472 = vmatprep.subr.bf16.mxu0 %v913
    %1473 = vmatpush1.bf16.msra.mxu0 %v912
    %1474 = vmatprep.subr.bf16.mxu0 %v917
    %1475 = vmatpush1.bf16.msra.mxu0 %v916
    %1476 = vmatprep.subr.bf16.mxu0 %v921
    %1477 = vmatpush1.bf16.msra.mxu0 %v920
    %1478 = vmatprep.subr.bf16.mxu0 %v925
    %1479 = vmatpush1.bf16.msra.mxu0 %v924
    %1480 = vmatprep.subr.bf16.mxu0 %v929
    %1481 = vmatpush1.bf16.msra.mxu0 %v928
    %1482 = vmatprep.subr.bf16.mxu0 %v933
    %1483 = vmatpush1.bf16.msra.mxu0 %v932
    %1484 = vmatprep.subr.bf16.mxu0 %v937
    %1485 = vmatpush1.bf16.msra.mxu0 %v936
    %1486 = vmatprep.subr.bf16.mxu0 %v941
    %1487 = vmatpush1.bf16.msra.mxu0 %v940
    %1488 = vmatprep.subr.bf16.mxu0 %v945
    %1489 = vmatpush1.bf16.msra.mxu0 %v944
    %1490 = vmatprep.subr.bf16.mxu0 %v949
    %1491 = vmatpush1.bf16.msra.mxu0 %v948
    %1492 = vmatprep.subr.bf16.mxu0 %v953
    %1493 = vmatpush1.bf16.msra.mxu0 %v952
    %1494 = vmatprep.subr.bf16.mxu0 %v957
    %1495 = vmatpush1.bf16.msra.mxu0 %v956
    %1496 = vmatprep.subr.bf16.mxu0 %v961
    %1497 = vmatpush1.bf16.msra.mxu0 %v960
    %1498 = vmatprep.mubr.bf16.mxu0 %v86
    %1499 = vmatmul.mubr.bf16.gmra.mrb[0].mxu0 %v85
    %v1500 = vpop.f32.mrb[0].mxu0
    %v1501 = vadd.f32 %v301, %v1500
    %v1502 = vpop.f32.mrb[0].mxu0
    %v1503 = vadd.f32 %v305, %v1502
    %v1504 = vpop.f32.mrb[0].mxu0
    %v1505 = vadd.f32 %v301, %v1504
    %v1506 = vpop.f32.mrb[0].mxu0
    %v1507 = vadd.f32 %v305, %v1506
    %1508 = vdwg.mxu0
    %1509 = vmatprep.subr.bf16.mxu0 %v965
    %1510 = vmatpush1.bf16.msra.mxu0 %v964
    %1511 = vmatprep.subr.bf16.mxu0 %v969
    %1512 = vmatpush1.bf16.msra.mxu0 %v968
    %1513 = vmatprep.subr.bf16.mxu0 %v973
    %1514 = vmatpush1.bf16.msra.mxu0 %v972
    %1515 = vmatprep.subr.bf16.mxu0 %v977
    %1516 = vmatpush1.bf16.msra.mxu0 %v976
    %1517 = vmatprep.subr.bf16.mxu0 %v981
    %1518 = vmatpush1.bf16.msra.mxu0 %v980
    %1519 = vmatprep.subr.bf16.mxu0 %v985
    %1520 = vmatpush1.bf16.msra.mxu0 %v984
    %1521 = vmatprep.subr.bf16.mxu0 %v989
    %1522 = vmatpush1.bf16.msra.mxu0 %v988
    %1523 = vmatprep.subr.bf16.mxu0 %v993
    %1524 = vmatpush1.bf16.msra.mxu0 %v992
    %1525 = vmatprep.subr.bf16.mxu0 %v997
    %1526 = vmatpush1.bf16.msra.mxu0 %v996
    %1527 = vmatprep.subr.bf16.mxu0 %v1001
    %1528 = vmatpush1.bf16.msra.mxu0 %v1000
    %1529 = vmatprep.subr.bf16.mxu0 %v1005
    %1530 = vmatpush1.bf16.msra.mxu0 %v1004
    %1531 = vmatprep.subr.bf16.mxu0 %v1009
    %1532 = vmatpush1.bf16.msra.mxu0 %v1008
    %1533 = vmatprep.subr.bf16.mxu0 %v1013
    %1534 = vmatpush1.bf16.msra.mxu0 %v1012
    %1535 = vmatprep.subr.bf16.mxu0 %v1017
    %1536 = vmatpush1.bf16.msra.mxu0 %v1016
    %1537 = vmatprep.subr.bf16.mxu0 %v1021
    %1538 = vmatpush1.bf16.msra.mxu0 %v1020
    %1539 = vmatprep.subr.bf16.mxu0 %v1025
    %1540 = vmatpush1.bf16.msra.mxu0 %v1024
    %1541 = vmatprep.mubr.bf16.mxu0 %v88
    %1542 = vmatmul.mubr.bf16.gmra.mrb[0].mxu0 %v87
    %v1543 = vpop.f32.mrb[0].mxu0
    %v1544 = vadd.f32 %v1501, %v1543
    %v1545 = vpop.f32.mrb[0].mxu0
    %v1546 = vadd.f32 %v1503, %v1545
    %v1547 = vpop.f32.mrb[0].mxu0
    %v1548 = vadd.f32 %v1505, %v1547
    %v1549 = vpop.f32.mrb[0].mxu0
    %v1550 = vadd.f32 %v1507, %v1549
    %1551 = vdwg.mxu0
    %1552 = vmatprep.subr.bf16.mxu0 %v1029
    %1553 = vmatpush1.bf16.msra.mxu0 %v1028
    %1554 = vmatprep.subr.bf16.mxu0 %v1033
    %1555 = vmatpush1.bf16.msra.mxu0 %v1032
    %1556 = vmatprep.subr.bf16.mxu0 %v1037
    %1557 = vmatpush1.bf16.msra.mxu0 %v1036
    %1558 = vmatprep.subr.bf16.mxu0 %v1041
    %1559 = vmatpush1.bf16.msra.mxu0 %v1040
    %1560 = vmatprep.subr.bf16.mxu0 %v1045
    %1561 = vmatpush1.bf16.msra.mxu0 %v1044
    %1562 = vmatprep.subr.bf16.mxu0 %v1049
    %1563 = vmatpush1.bf16.msra.mxu0 %v1048
    %1564 = vmatprep.subr.bf16.mxu0 %v1053
    %1565 = vmatpush1.bf16.msra.mxu0 %v1052
    %1566 = vmatprep.subr.bf16.mxu0 %v1057
    %1567 = vmatpush1.bf16.msra.mxu0 %v1056
    %1568 = vmatprep.subr.bf16.mxu0 %v1061
    %1569 = vmatpush1.bf16.msra.mxu0 %v1060
    %1570 = vmatprep.subr.bf16.mxu0 %v1065
    %1571 = vmatpush1.bf16.msra.mxu0 %v1064
    %1572 = vmatprep.subr.bf16.mxu0 %v1069
    %1573 = vmatpush1.bf16.msra.mxu0 %v1068
    %1574 = vmatprep.subr.bf16.mxu0 %v1073
    %1575 = vmatpush1.bf16.msra.mxu0 %v1072
    %1576 = vmatprep.subr.bf16.mxu0 %v1077
    %1577 = vmatpush1.bf16.msra.mxu0 %v1076
    %1578 = vmatprep.subr.bf16.mxu0 %v1081
    %1579 = vmatpush1.bf16.msra.mxu0 %v1080
    %1580 = vmatprep.subr.bf16.mxu0 %v1085
    %1581 = vmatpush1.bf16.msra.mxu0 %v1084
    %1582 = vmatprep.subr.bf16.mxu0 %v1089
    %1583 = vmatpush1.bf16.msra.mxu0 %v1088
    %1584 = vmatprep.mubr.bf16.mxu0 %v90
    %1585 = vmatmul.mubr.bf16.gmra.mrb[0].mxu0 %v89
    %v1586 = vpop.f32.mrb[0].mxu0
    %v1587 = vadd.f32 %v1544, %v1586
    %v1588 = vpop.f32.mrb[0].mxu0
    %v1589 = vadd.f32 %v1546, %v1588
    %v1590 = vpop.f32.mrb[0].mxu0
    %v1591 = vadd.f32 %v1548, %v1590
    %v1592 = vpop.f32.mrb[0].mxu0
    %v1593 = vadd.f32 %v1550, %v1592
    %1594 = vdwg.mxu0
    %1595 = vmatprep.subr.bf16.mxu0 %v1093
    %1596 = vmatpush1.bf16.msra.mxu0 %v1092
    %1597 = vmatprep.subr.bf16.mxu0 0
    %1598 = vmatpush1.bf16.msra.mxu0 0
    %1599 = vmatprep.subr.bf16.mxu0 0
    %1600 = vmatpush1.bf16.msra.mxu0 0
    %1601 = vmatprep.subr.bf16.mxu0 0
    %1602 = vmatpush1.bf16.msra.mxu0 0
    %1603 = vmatprep.subr.bf16.mxu0 0
    %1604 = vmatpush1.bf16.msra.mxu0 0
    %1605 = vmatprep.subr.bf16.mxu0 0
    %1606 = vmatpush1.bf16.msra.mxu0 0
    %1607 = vmatprep.subr.bf16.mxu0 0
    %1608 = vmatpush1.bf16.msra.mxu0 0
    %1609 = vmatprep.subr.bf16.mxu0 0
    %1610 = vmatpush1.bf16.msra.mxu0 0
    %1611 = vmatprep.subr.bf16.mxu0 0
    %1612 = vmatpush1.bf16.msra.mxu0 0
    %1613 = vmatprep.subr.bf16.mxu0 0
    %1614 = vmatpush1.bf16.msra.mxu0 0
    %1615 = vmatprep.subr.bf16.mxu0 0
    %1616 = vmatpush1.bf16.msra.mxu0 0
    %1617 = vmatprep.subr.bf16.mxu0 0
    %1618 = vmatpush1.bf16.msra.mxu0 0
    %1619 = vmatprep.subr.bf16.mxu0 0
    %1620 = vmatpush1.bf16.msra.mxu0 0
    %1621 = vmatprep.subr.bf16.mxu0 0
    %1622 = vmatpush1.bf16.msra.mxu0 0
    %1623 = vmatprep.subr.bf16.mxu0 0
    %1624 = vmatpush1.bf16.msra.mxu0 0
    %1625 = vmatprep.subr.bf16.mxu0 0
    %1626 = vmatpush1.bf16.msra.mxu0 0
    %1627 = vmatprep.mubr.bf16.mxu0 0
    %1628 = vmatmul.mubr.bf16.gmra.mrb[0].mxu0 %v1292
    %v1629 = vpop.f32.mrb[0].mxu0
    %v1630 = vadd.f32 %v1587, %v1629
    %v1631 = vpop.f32.mrb[0].mxu0
    %v1632 = vadd.f32 %v1589, %v1631
    %v1633 = vpop.f32.mrb[0].mxu0
    %v1634 = vadd.f32 %v1591, %v1633
    %v1635 = vpop.f32.mrb[0].mxu0
    %v1636 = vadd.f32 %v1593, %v1635
    %1637 = vdwg.mxu0
    %vm1638 = vcmp.gt.f32.partialorder %v1458, 0.0
    %vm1639 = vcmp.gt.f32.partialorder %v1460, 0.0
    %vm1640 = vcmp.gt.f32.partialorder %v1630, 0.0
    %vm1641 = vcmp.gt.f32.partialorder %v1632, 0.0
    %vm1642 = vcmp.gt.f32.partialorder %v1462, 0.0
    %vm1643 = vcmp.gt.f32.partialorder %v1464, 0.0
    %vm1644 = vcmp.gt.f32.partialorder %v1634, 0.0
    %vm1645 = vcmp.gt.f32.partialorder %v1636, 0.0
    %v1646 = vmul.f32 %v1458, 0.2
    %v1647 = vmul.f32 %v1460, 0.2
    %v1648 = vmul.f32 %v1630, 0.2
    %v1649 = vmul.f32 %v1632, 0.2
    %v1650 = vmul.f32 %v1462, 0.2
    %v1651 = vmul.f32 %v1464, 0.2
    %v1652 = vmul.f32 %v1634, 0.2
    %v1653 = vmul.f32 %v1636, 0.2
    %v1654 = vsel %vm1638, %v1458, %v1646
    %v1655 = vsel %vm1639, %v1460, %v1647
    %v1656 = vsel %vm1640, %v1630, %v1648
    %v1657 = vsel %vm1641, %v1632, %v1649
    %v1658 = vsel %vm1642, %v1462, %v1650
    %v1659 = vsel %vm1643, %v1464, %v1651
    %v1660 = vsel %vm1644, %v1634, %v1652
    %v1661 = vsel %vm1645, %v1636, %v1653
    %v1662 = vpack.c.bf16 %v1658, %v1654
    %v1663 = vpack.c.bf16 %v1659, %v1655
    %v1664 = vpack.c.bf16 %v1660, %v1656
    %v1665 = vpack.c.bf16 %v1661, %v1657
    %v1666 = vld [vmem:[#allocation8] sm:$0xff]
    %v1667 = vld [vmem:[#allocation8 + $0x8] sm:$0xff]
    %v1668 = vld [vmem:[#allocation8 + $0x10] sm:$0xff]
    %v1669 = vld [vmem:[#allocation8 + $0x18] sm:$0xff]
    %v1670 = vld [vmem:[#allocation8 + $0x20] sm:$0xff]
    %v1671 = vld [vmem:[#allocation8 + $0x28] sm:$0xff]
    %v1672 = vld [vmem:[#allocation8 + $0x30] sm:$0xff]
    %v1673 = vld [vmem:[#allocation8 + $0x38] sm:$0xff]
    %v1674 = vld [vmem:[#allocation8 + $0x40] sm:$0xff]
    %v1675 = vld [vmem:[#allocation8 + $0x48] sm:$0xff]
    %v1676 = vld [vmem:[#allocation8 + $0x50] sm:$0xff]
    %v1677 = vld [vmem:[#allocation8 + $0x58] sm:$0xff]
    %v1678 = vld [vmem:[#allocation8 + $0x60] sm:$0xff]
    %v1679 = vld [vmem:[#allocation8 + $0x68] sm:$0xff]
    %v1680 = vld [vmem:[#allocation8 + $0x70] sm:$0xff]
    %v1681 = vld [vmem:[#allocation8 + $0x78] sm:$0xff]
    %v1682 = vld [vmem:[#allocation8 + $0x80] sm:$0xff]
    %v1683 = vld [vmem:[#allocation8 + $0x88] sm:$0xff]
    %v1684 = vld [vmem:[#allocation8 + $0x90] sm:$0xff]
    %v1685 = vld [vmem:[#allocation8 + $0x98] sm:$0xff]
    %v1686 = vld [vmem:[#allocation8 + $0xa0] sm:$0xff]
    %v1687 = vld [vmem:[#allocation8 + $0xa8] sm:$0xff]
    %v1688 = vld [vmem:[#allocation8 + $0xb0] sm:$0xff]
    %v1689 = vld [vmem:[#allocation8 + $0xb8] sm:$0xff]
    %v1690 = vld [vmem:[#allocation8 + $0xc0] sm:$0xff]
    %v1691 = vld [vmem:[#allocation8 + $0xc8] sm:$0xff]
    %v1692 = vld [vmem:[#allocation8 + $0xd0] sm:$0xff]
    %v1693 = vld [vmem:[#allocation8 + $0xd8] sm:$0xff]
    %v1694 = vld [vmem:[#allocation8 + $0xe0] sm:$0xff]
    %v1695 = vld [vmem:[#allocation8 + $0xe8] sm:$0xff]
    %v1696 = vld [vmem:[#allocation8 + $0xf0] sm:$0xff]
    %v1697 = vld [vmem:[#allocation8 + $0xf8] sm:$0xff]
    %v1698 = vld [vmem:[#allocation8 + $0x100] sm:$0xff]
    %v1699 = vld [vmem:[#allocation8 + $0x108] sm:$0xff]
    %v1700 = vld [vmem:[#allocation8 + $0x110] sm:$0xff]
    %v1701 = vld [vmem:[#allocation8 + $0x118] sm:$0xff]
    %v1702 = vld [vmem:[#allocation8 + $0x120] sm:$0xff]
    %v1703 = vld [vmem:[#allocation8 + $0x128] sm:$0xff]
    %v1704 = vld [vmem:[#allocation8 + $0x130] sm:$0xff]
    %v1705 = vld [vmem:[#allocation8 + $0x138] sm:$0xff]
    %v1706 = vld [vmem:[#allocation8 + $0x140] sm:$0xff]
    %v1707 = vld [vmem:[#allocation8 + $0x148] sm:$0xff]
    %v1708 = vld [vmem:[#allocation8 + $0x150] sm:$0xff]
    %v1709 = vld [vmem:[#allocation8 + $0x158] sm:$0xff]
    %v1710 = vld [vmem:[#allocation8 + $0x160] sm:$0xff]
    %v1711 = vld [vmem:[#allocation8 + $0x168] sm:$0xff]
    %v1712 = vld [vmem:[#allocation8 + $0x170] sm:$0xff]
    %v1713 = vld [vmem:[#allocation8 + $0x178] sm:$0xff]
    %v1714 = vld [vmem:[#allocation8 + $0x180] sm:$0xff]
    %v1715 = vld [vmem:[#allocation8 + $0x188] sm:$0xff]
    %v1716 = vld [vmem:[#allocation8 + $0x190] sm:$0xff]
    %v1717 = vld [vmem:[#allocation8 + $0x198] sm:$0xff]
    %v1718 = vld [vmem:[#allocation8 + $0x1a0] sm:$0xff]
    %v1719 = vld [vmem:[#allocation8 + $0x1a8] sm:$0xff]
    %v1720 = vld [vmem:[#allocation8 + $0x1b0] sm:$0xff]
    %v1721 = vld [vmem:[#allocation8 + $0x1b8] sm:$0xff]
    %v1722 = vld [vmem:[#allocation8 + $0x1c0] sm:$0xff]
    %v1723 = vld [vmem:[#allocation8 + $0x1c8] sm:$0xff]
    %v1724 = vld [vmem:[#allocation8 + $0x1d0] sm:$0xff]
    %v1725 = vld [vmem:[#allocation8 + $0x1d8] sm:$0xff]
    %v1726 = vld [vmem:[#allocation8 + $0x1e0] sm:$0xff]
    %v1727 = vld [vmem:[#allocation8 + $0x1e8] sm:$0xff]
    %v1728 = vld [vmem:[#allocation8 + $0x1f0] sm:$0xff]
    %v1729 = vld [vmem:[#allocation8 + $0x1f8] sm:$0xff]
    %v1730 = vld [vmem:[%s4] sm:$0x3]
    %v1732 = vlaneseq
    %v1733 = vshrl.u32 %v1732, 7
    %v1734 = vsub.s32 0, %v1733
    %v1735 = vrot.slane %v1730, %v1734
    %v1736 = vlaneseq
    %v1737 = vshrl.u32 %v1736, 7
    %v1738 = vsub.s32 1, %v1737
    %v1739 = vrot.slane %v1730, %v1738
    %v1806 = vunpack.c.l.b16 %v1666
    %v1807 = vunpack.c.h.b16 %v1666
    %v1808 = vunpack.c.l.b16 %v1667
    %v1809 = vunpack.c.h.b16 %v1667
    %v1810 = vunpack.c.l.b16 %v1668
    %v1811 = vunpack.c.h.b16 %v1668
    %v1812 = vunpack.c.l.b16 %v1669
    %v1813 = vunpack.c.h.b16 %v1669
    %v1814 = vunpack.c.l.b16 %v1670
    %v1815 = vunpack.c.h.b16 %v1670
    %v1816 = vunpack.c.l.b16 %v1671
    %v1817 = vunpack.c.h.b16 %v1671
    %v1818 = vunpack.c.l.b16 %v1672
    %v1819 = vunpack.c.h.b16 %v1672
    %v1820 = vunpack.c.l.b16 %v1673
    %v1821 = vunpack.c.h.b16 %v1673
    %v1822 = vunpack.c.l.b16 %v1674
    %v1823 = vunpack.c.h.b16 %v1674
    %v1824 = vunpack.c.l.b16 %v1675
    %v1825 = vunpack.c.h.b16 %v1675
    %v1826 = vunpack.c.l.b16 %v1676
    %v1827 = vunpack.c.h.b16 %v1676
    %v1828 = vunpack.c.l.b16 %v1677
    %v1829 = vunpack.c.h.b16 %v1677
    %v1830 = vunpack.c.l.b16 %v1678
    %v1831 = vunpack.c.h.b16 %v1678
    %v1832 = vunpack.c.l.b16 %v1679
    %v1833 = vunpack.c.h.b16 %v1679
    %v1834 = vunpack.c.l.b16 %v1680
    %v1835 = vunpack.c.h.b16 %v1680
    %v1836 = vunpack.c.l.b16 %v1681
    %v1837 = vunpack.c.h.b16 %v1681
    %v1838 = vunpack.c.l.b16 %v1682
    %v1839 = vunpack.c.h.b16 %v1682
    %v1840 = vunpack.c.l.b16 %v1683
    %v1841 = vunpack.c.h.b16 %v1683
    %v1842 = vunpack.c.l.b16 %v1684
    %v1843 = vunpack.c.h.b16 %v1684
    %v1844 = vunpack.c.l.b16 %v1685
    %v1845 = vunpack.c.h.b16 %v1685
    %v1846 = vunpack.c.l.b16 %v1686
    %v1847 = vunpack.c.h.b16 %v1686
    %v1848 = vunpack.c.l.b16 %v1687
    %v1849 = vunpack.c.h.b16 %v1687
    %v1850 = vunpack.c.l.b16 %v1688
    %v1851 = vunpack.c.h.b16 %v1688
    %v1852 = vunpack.c.l.b16 %v1689
    %v1853 = vunpack.c.h.b16 %v1689
    %v1854 = vunpack.c.l.b16 %v1690
    %v1855 = vunpack.c.h.b16 %v1690
    %v1856 = vunpack.c.l.b16 %v1691
    %v1857 = vunpack.c.h.b16 %v1691
    %v1858 = vunpack.c.l.b16 %v1692
    %v1859 = vunpack.c.h.b16 %v1692
    %v1860 = vunpack.c.l.b16 %v1693
    %v1861 = vunpack.c.h.b16 %v1693
    %v1862 = vunpack.c.l.b16 %v1694
    %v1863 = vunpack.c.h.b16 %v1694
    %v1864 = vunpack.c.l.b16 %v1695
    %v1865 = vunpack.c.h.b16 %v1695
    %v1866 = vunpack.c.l.b16 %v1696
    %v1867 = vunpack.c.h.b16 %v1696
    %v1868 = vunpack.c.l.b16 %v1697
    %v1869 = vunpack.c.h.b16 %v1697
    %v1870 = vunpack.c.l.b16 %v1698
    %v1871 = vunpack.c.h.b16 %v1698
    %v1872 = vunpack.c.l.b16 %v1699
    %v1873 = vunpack.c.h.b16 %v1699
    %v1874 = vunpack.c.l.b16 %v1700
    %v1875 = vunpack.c.h.b16 %v1700
    %v1876 = vunpack.c.l.b16 %v1701
    %v1877 = vunpack.c.h.b16 %v1701
    %v1878 = vunpack.c.l.b16 %v1702
    %v1879 = vunpack.c.h.b16 %v1702
    %v1880 = vunpack.c.l.b16 %v1703
    %v1881 = vunpack.c.h.b16 %v1703
    %v1882 = vunpack.c.l.b16 %v1704
    %v1883 = vunpack.c.h.b16 %v1704
    %v1884 = vunpack.c.l.b16 %v1705
    %v1885 = vunpack.c.h.b16 %v1705
    %v1886 = vunpack.c.l.b16 %v1706
    %v1887 = vunpack.c.h.b16 %v1706
    %v1888 = vunpack.c.l.b16 %v1707
    %v1889 = vunpack.c.h.b16 %v1707
    %v1890 = vunpack.c.l.b16 %v1708
    %v1891 = vunpack.c.h.b16 %v1708
    %v1892 = vunpack.c.l.b16 %v1709
    %v1893 = vunpack.c.h.b16 %v1709
    %v1894 = vunpack.c.l.b16 %v1710
    %v1895 = vunpack.c.h.b16 %v1710
    %v1896 = vunpack.c.l.b16 %v1711
    %v1897 = vunpack.c.h.b16 %v1711
    %v1898 = vunpack.c.l.b16 %v1712
    %v1899 = vunpack.c.h.b16 %v1712
    %v1900 = vunpack.c.l.b16 %v1713
    %v1901 = vunpack.c.h.b16 %v1713
    %v1902 = vunpack.c.l.b16 %v1714
    %v1903 = vunpack.c.h.b16 %v1714
    %v1904 = vunpack.c.l.b16 %v1715
    %v1905 = vunpack.c.h.b16 %v1715
    %v1906 = vunpack.c.l.b16 %v1716
    %v1907 = vunpack.c.h.b16 %v1716
    %v1908 = vunpack.c.l.b16 %v1717
    %v1909 = vunpack.c.h.b16 %v1717
    %v1910 = vunpack.c.l.b16 %v1718
    %v1911 = vunpack.c.h.b16 %v1718
    %v1912 = vunpack.c.l.b16 %v1719
    %v1913 = vunpack.c.h.b16 %v1719
    %v1914 = vunpack.c.l.b16 %v1720
    %v1915 = vunpack.c.h.b16 %v1720
    %v1916 = vunpack.c.l.b16 %v1721
    %v1917 = vunpack.c.h.b16 %v1721
    %v1918 = vunpack.c.l.b16 %v1722
    %v1919 = vunpack.c.h.b16 %v1722
    %v1920 = vunpack.c.l.b16 %v1723
    %v1921 = vunpack.c.h.b16 %v1723
    %v1922 = vunpack.c.l.b16 %v1724
    %v1923 = vunpack.c.h.b16 %v1724
    %v1924 = vunpack.c.l.b16 %v1725
    %v1925 = vunpack.c.h.b16 %v1725
    %v1926 = vunpack.c.l.b16 %v1726
    %v1927 = vunpack.c.h.b16 %v1726
    %v1928 = vunpack.c.l.b16 %v1727
    %v1929 = vunpack.c.h.b16 %v1727
    %v1930 = vunpack.c.l.b16 %v1728
    %v1931 = vunpack.c.h.b16 %v1728
    %v1932 = vunpack.c.l.b16 %v1729
    %v1933 = vunpack.c.h.b16 %v1729
    %v1934 = vpack.c.b16 %v1808, %v1806
    %v1935 = vpack.c.b16 %v1809, %v1807
    %v1936 = vpack.c.b16 %v1812, %v1810
    %v1937 = vpack.c.b16 %v1813, %v1811
    %v1938 = vpack.c.b16 %v1816, %v1814
    %v1939 = vpack.c.b16 %v1817, %v1815
    %v1940 = vpack.c.b16 %v1820, %v1818
    %v1941 = vpack.c.b16 %v1821, %v1819
    %v1942 = vpack.c.b16 %v1824, %v1822
    %v1943 = vpack.c.b16 %v1825, %v1823
    %v1944 = vpack.c.b16 %v1828, %v1826
    %v1945 = vpack.c.b16 %v1829, %v1827
    %v1946 = vpack.c.b16 %v1832, %v1830
    %v1947 = vpack.c.b16 %v1833, %v1831
    %v1948 = vpack.c.b16 %v1836, %v1834
    %v1949 = vpack.c.b16 %v1837, %v1835
    %v1950 = vpack.c.b16 %v1840, %v1838
    %v1951 = vpack.c.b16 %v1841, %v1839
    %v1952 = vpack.c.b16 %v1844, %v1842
    %v1953 = vpack.c.b16 %v1845, %v1843
    %v1954 = vpack.c.b16 %v1848, %v1846
    %v1955 = vpack.c.b16 %v1849, %v1847
    %v1956 = vpack.c.b16 %v1852, %v1850
    %v1957 = vpack.c.b16 %v1853, %v1851
    %v1958 = vpack.c.b16 %v1856, %v1854
    %v1959 = vpack.c.b16 %v1857, %v1855
    %v1960 = vpack.c.b16 %v1860, %v1858
    %v1961 = vpack.c.b16 %v1861, %v1859
    %v1962 = vpack.c.b16 %v1864, %v1862
    %v1963 = vpack.c.b16 %v1865, %v1863
    %v1964 = vpack.c.b16 %v1868, %v1866
    %v1965 = vpack.c.b16 %v1869, %v1867
    %v1966 = vpack.c.b16 %v1872, %v1870
    %v1967 = vpack.c.b16 %v1873, %v1871
    %v1968 = vpack.c.b16 %v1876, %v1874
    %v1969 = vpack.c.b16 %v1877, %v1875
    %v1970 = vpack.c.b16 %v1880, %v1878
    %v1971 = vpack.c.b16 %v1881, %v1879
    %v1972 = vpack.c.b16 %v1884, %v1882
    %v1973 = vpack.c.b16 %v1885, %v1883
    %v1974 = vpack.c.b16 %v1888, %v1886
    %v1975 = vpack.c.b16 %v1889, %v1887
    %v1976 = vpack.c.b16 %v1892, %v1890
    %v1977 = vpack.c.b16 %v1893, %v1891
    %v1978 = vpack.c.b16 %v1896, %v1894
    %v1979 = vpack.c.b16 %v1897, %v1895
    %v1980 = vpack.c.b16 %v1900, %v1898
    %v1981 = vpack.c.b16 %v1901, %v1899
    %v1982 = vpack.c.b16 %v1904, %v1902
    %v1983 = vpack.c.b16 %v1905, %v1903
    %v1984 = vpack.c.b16 %v1908, %v1906
    %v1985 = vpack.c.b16 %v1909, %v1907
    %v1986 = vpack.c.b16 %v1912, %v1910
    %v1987 = vpack.c.b16 %v1913, %v1911
    %v1988 = vpack.c.b16 %v1916, %v1914
    %v1989 = vpack.c.b16 %v1917, %v1915
    %v1990 = vpack.c.b16 %v1920, %v1918
    %v1991 = vpack.c.b16 %v1921, %v1919
    %v1992 = vpack.c.b16 %v1924, %v1922
    %v1993 = vpack.c.b16 %v1925, %v1923
    %v1994 = vpack.c.b16 %v1928, %v1926
    %v1995 = vpack.c.b16 %v1929, %v1927
    %v1996 = vpack.c.b16 %v1932, %v1930
    %v1997 = vpack.c.b16 %v1933, %v1931
    %2062 = vmatprep.subr.bf16.mxu0 %v1935
    %2063 = vmatpush1.bf16.msra.mxu0 %v1934
    %2064 = vmatprep.subr.bf16.mxu0 %v1937
    %2065 = vmatpush1.bf16.msra.mxu0 %v1936
    %2066 = vmatprep.subr.bf16.mxu0 %v1939
    %2067 = vmatpush1.bf16.msra.mxu0 %v1938
    %2068 = vmatprep.subr.bf16.mxu0 %v1941
    %2069 = vmatpush1.bf16.msra.mxu0 %v1940
    %2070 = vmatprep.subr.bf16.mxu0 %v1943
    %2071 = vmatpush1.bf16.msra.mxu0 %v1942
    %2072 = vmatprep.subr.bf16.mxu0 %v1945
    %2073 = vmatpush1.bf16.msra.mxu0 %v1944
    %2074 = vmatprep.subr.bf16.mxu0 %v1947
    %2075 = vmatpush1.bf16.msra.mxu0 %v1946
    %2076 = vmatprep.subr.bf16.mxu0 %v1949
    %2077 = vmatpush1.bf16.msra.mxu0 %v1948
    %2078 = vmatprep.subr.bf16.mxu0 %v1951
    %2079 = vmatpush1.bf16.msra.mxu0 %v1950
    %2080 = vmatprep.subr.bf16.mxu0 %v1953
    %2081 = vmatpush1.bf16.msra.mxu0 %v1952
    %2082 = vmatprep.subr.bf16.mxu0 %v1955
    %2083 = vmatpush1.bf16.msra.mxu0 %v1954
    %2084 = vmatprep.subr.bf16.mxu0 %v1957
    %2085 = vmatpush1.bf16.msra.mxu0 %v1956
    %2086 = vmatprep.subr.bf16.mxu0 %v1959
    %2087 = vmatpush1.bf16.msra.mxu0 %v1958
    %2088 = vmatprep.subr.bf16.mxu0 %v1961
    %2089 = vmatpush1.bf16.msra.mxu0 %v1960
    %2090 = vmatprep.subr.bf16.mxu0 %v1963
    %2091 = vmatpush1.bf16.msra.mxu0 %v1962
    %2092 = vmatprep.subr.bf16.mxu0 %v1965
    %2093 = vmatpush1.bf16.msra.mxu0 %v1964
    %2094 = vmatprep.mubr.bf16.mxu0 %v1663
    %2095 = vmatmul.mubr.bf16.gmra.mrb[0].mxu0 %v1662
    %v2096 = vpop.f32.mrb[0].mxu0
    %v2097 = vadd.f32 %v1735, %v2096
    %v2098 = vpop.f32.mrb[0].mxu0
    %v2099 = vadd.f32 %v1739, %v2098
    %v2100 = vpop.f32.mrb[0].mxu0
    %v2101 = vadd.f32 %v1735, %v2100
    %v2102 = vpop.f32.mrb[0].mxu0
    %v2103 = vadd.f32 %v1739, %v2102
    %2104 = vdwg.mxu0
    %2105 = vmatprep.subr.bf16.mxu0 %v1967
    %2106 = vmatpush1.bf16.msra.mxu0 %v1966
    %2107 = vmatprep.subr.bf16.mxu0 %v1969
    %2108 = vmatpush1.bf16.msra.mxu0 %v1968
    %2109 = vmatprep.subr.bf16.mxu0 %v1971
    %2110 = vmatpush1.bf16.msra.mxu0 %v1970
    %2111 = vmatprep.subr.bf16.mxu0 %v1973
    %2112 = vmatpush1.bf16.msra.mxu0 %v1972
    %2113 = vmatprep.subr.bf16.mxu0 %v1975
    %2114 = vmatpush1.bf16.msra.mxu0 %v1974
    %2115 = vmatprep.subr.bf16.mxu0 %v1977
    %2116 = vmatpush1.bf16.msra.mxu0 %v1976
    %2117 = vmatprep.subr.bf16.mxu0 %v1979
    %2118 = vmatpush1.bf16.msra.mxu0 %v1978
    %2119 = vmatprep.subr.bf16.mxu0 %v1981
    %2120 = vmatpush1.bf16.msra.mxu0 %v1980
    %2121 = vmatprep.subr.bf16.mxu0 %v1983
    %2122 = vmatpush1.bf16.msra.mxu0 %v1982
    %2123 = vmatprep.subr.bf16.mxu0 %v1985
    %2124 = vmatpush1.bf16.msra.mxu0 %v1984
    %2125 = vmatprep.subr.bf16.mxu0 %v1987
    %2126 = vmatpush1.bf16.msra.mxu0 %v1986
    %2127 = vmatprep.subr.bf16.mxu0 %v1989
    %2128 = vmatpush1.bf16.msra.mxu0 %v1988
    %2129 = vmatprep.subr.bf16.mxu0 %v1991
    %2130 = vmatpush1.bf16.msra.mxu0 %v1990
    %2131 = vmatprep.subr.bf16.mxu0 %v1993
    %2132 = vmatpush1.bf16.msra.mxu0 %v1992
    %2133 = vmatprep.subr.bf16.mxu0 %v1995
    %2134 = vmatpush1.bf16.msra.mxu0 %v1994
    %2135 = vmatprep.subr.bf16.mxu0 %v1997
    %2136 = vmatpush1.bf16.msra.mxu0 %v1996
    %2137 = vmatprep.mubr.bf16.mxu0 %v1665
    %2138 = vmatmul.mubr.bf16.gmra.mrb[0].mxu0 %v1664
    %v2139 = vpop.f32.mrb[0].mxu0
    %v2140 = vadd.f32 %v2097, %v2139
    %v2141 = vpop.f32.mrb[0].mxu0
    %v2142 = vadd.f32 %v2099, %v2141
    %v2143 = vpop.f32.mrb[0].mxu0
    %v2144 = vadd.f32 %v2101, %v2143
    %v2145 = vpop.f32.mrb[0].mxu0
    %v2146 = vadd.f32 %v2103, %v2145
    %2147 = vdwg.mxu0
    %vm2148 = vcmp.gt.f32.partialorder %v2140, 0.0
    %vm2149 = vcmp.gt.f32.partialorder %v2142, 0.0
    %vm2150 = vcmp.gt.f32.partialorder %v2144, 0.0
    %vm2151 = vcmp.gt.f32.partialorder %v2146, 0.0
    %v2152 = vmul.f32 %v2140, 0.2
    %v2153 = vmul.f32 %v2142, 0.2
    %v2154 = vmul.f32 %v2144, 0.2
    %v2155 = vmul.f32 %v2146, 0.2
    %v2156 = vsel %vm2148, %v2140, %v2152
    %v2157 = vsel %vm2149, %v2142, %v2153
    %v2158 = vsel %vm2150, %v2144, %v2154
    %v2159 = vsel %vm2151, %v2146, %v2155
    %v2160 = vld [vmem:[%s5] sm:$0x3]
    %v2162 = vlaneseq
    %v2163 = vshrl.u32 %v2162, 7
    %v2164 = vsub.s32 0, %v2163
    %v2165 = vrot.slane %v2160, %v2164
    %v2166 = vlaneseq
    %v2167 = vshrl.u32 %v2166, 7
    %v2168 = vsub.s32 1, %v2167
    %v2169 = vrot.slane %v2160, %v2168
    %v2172 = vmul.f32 %v2156, %v2165
    %v2173 = vmul.f32 %v2157, %v2169
    %v2174 = vmul.f32 %v2158, %v2165
    %v2175 = vmul.f32 %v2159, %v2169
    %v2176 = vadd.f32 %v2172, %v2173
    %2177 = vadd.xlane.f32.xlu0 %v2176
    %v2178 = vpop.xlane.xlu0 %2177
    %v2179 = vadd.f32 %v2174, %v2175
    %2180 = vadd.xlane.f32.xlu0 %v2179
    %v2181 = vpop.xlane.xlu0 %2180
    %v2182 = vld [vmem:[#allocation2] sm:$0x1]
    %2184 = vset.pattern.permute.xlu0 0
    %2185 = vperm.xlu0 %2184, %v2182
    %v2186 = vpop.permute.xlu0 %2185
    %v2188 = vlaneseq
    %v2189 = vshrl.u32 %v2188, 7
    %v2190 = vsub.s32 0, %v2189
    %v2191 = vrot.slane %v2186, %v2190
    %v2192 = vadd.f32 %v2178, %v2191
    %v2193 = vadd.f32 %v2181, %v2191
    %v2194 = vxor.u32 %v2192, 2147483648
    %v2195 = vxor.u32 %v2193, 2147483648
    %v2196 = vmul.f32 %v2194, 1.442695
    %v2197 = vpow.pop %v2196
    %v2198 = vmul.f32 %v2195, 1.442695
    %v2199 = vpow.pop %v2198
    %v2200 = vadd.f32 %v2197, 1.0
    %v2201 = vadd.f32 %v2199, 1.0
    %v2202 = vrcp.pop %v2200
    %v2203 = vmul.f32 1.0, %v2202
    %v2204 = vrcp.pop %v2201
    %v2205 = vmul.f32 1.0, %v2204
    %v2208 = vlaneseq
    %v2209 = vand.u32 %v2208, 127
    %v2210 = vlaneseq
    %v2211 = vshrl.u32 %v2210, 7
    %v2212 = vsub.s32 %v2209, %v2211
    %v2213 = vrot.slane %v2203, %v2212
    %v2214 = vadd.s32 %v2209, 4294967288
    %v2215 = vlaneseq
    %v2216 = vshrl.u32 %v2215, 7
    %v2217 = vsub.s32 %v2214, %v2216
    %v2218 = vrot.slane %v2205, %v2217
    %vm2219 = vcmask 130112
    %v2220 = vsel %vm2219, %v2218, %v2213
    %vm2222 = vcmask 122880
    %2223 = vst.msk [vmem:[#allocation9] sm:$0x1] %vm2222, %v2220
    // Predicated region
    $region42: #{tpu_custom_call.1} parent=1 // pred_check
      _
    $region43: #{tpu_custom_call.1} parent=1 // pred_check_branch
      %2225 = sbr.rel (0) target = $region45
    $region44: #{tpu_custom_call.1} parent=1 // pred_region
      %s2227 = ssub.s32 16, 16
      %2228 = vsyncadd [#allocation5], %s2227
      %s2230 = sshll.u32 [#allocation9], 4
      %s2231 = int_to_ptr.vmem [resolvable:$true] %s2230
      %2233 = dma.vmem_to_hbm [thread:$0]  %s2231, 16, %s7, [#allocation5]
    $region45: #{tpu_custom_call.1} parent=1 // pred_fallthru
      _
    // Predicated region
    $region46: #{tpu_custom_call.1} parent=1 // pred_check
      _
    $region47: #{tpu_custom_call.1} parent=1 // pred_check_branch
      %2235 = sbr.rel (0) target = $region49
    $region48: #{tpu_custom_call.1} parent=1 // pred_region
      %2236 = dma.done [#allocation5], 16
    $region49: #{tpu_custom_call.1} parent=1 // pred_fallthru
      _
    %2237 = vsyncpa [#allocation4], 1
    %2238 = vsyncpa [#allocation7], 1
    %2239 = vsyncpa [#allocation5], 1

</llo_original>
